<compile_context>
chip_gen: v7x
topology: tpu7x:2x2x1
jax: 0.10.0
libtpu: 0.0.40
codegen_flags: <defaults>
</compile_context>

<pallas_src>
import functools

import jax
import jax.numpy as jnp
from jax.experimental import pallas as pl
from jax.experimental.pallas import tpu as pltpu


def _cvae_kernel(batch, tile_b,
                 # inputs
                 x_ref, noise_ref,
                 ew1, eb1, eg1, ebt1,
                 ew2, eb2, eg2, ebt2,
                 ew3m, eb3m, ew3l, eb3l,
                 dw1, db1, dg1, dbt1,
                 dw2, db2, dg2, dbt2,
                 dw3, db3,
                 # outputs
                 rec_ref, lat_ref, loss_ref):
    x = x_ref[...]                                    # (TB, D) f32

    def linear(h, w_ref, b_ref):
        # bf16 MXU operands, f32 accumulation, f32 bias add.
        return jnp.dot(h.astype(jnp.bfloat16), w_ref[...],
                       preferred_element_type=jnp.float32) + b_ref[...]

    def ln_relu(h, g_ref, b_ref):
        # nn.LayerNorm(out_size), eps=1e-5, biased variance, then ReLU (f32).
        m = jnp.mean(h, axis=-1, keepdims=True)
        c = h - m
        v = jnp.mean(c * c, axis=-1, keepdims=True)
        hn = c * jax.lax.rsqrt(v + 1e-5)
        hn = hn * g_ref[...] + b_ref[...]
        # TODO(synk): nn.Dropout(p=0.05) omitted (eval-mode identity semantics).
        return jnp.maximum(hn, 0.0)

    # ---- encoder: Linear+LN+ReLU, Linear+LN+ReLU, split mu/logvar heads ----
    h = ln_relu(linear(x, ew1, eb1), eg1, ebt1)
    h = ln_relu(linear(h, ew2, eb2), eg2, ebt2)
    mu = linear(h, ew3m, eb3m)                        # (TB, Lz)
    logvar = linear(h, ew3l, eb3l)                    # (TB, Lz)

    e = jnp.exp(logvar)                               # reused for std and KLD
    std = jnp.sqrt(e + 1e-4)
    # torch.rand_like -> uniform[0,1) noise, supplied from the host.
    z = mu + std * noise_ref[...]

    # ---- decoder: Linear+LN+ReLU, Linear+LN+ReLU, Linear -> input_dim ----
    h = ln_relu(linear(z, dw1, db1), dg1, dbt1)
    h = ln_relu(linear(h, dw2, db2), dg2, dbt2)
    rec = linear(h, dw3, db3)

    rec_ref[...] = rec
    # one lane-dense (TB, 4*Lz) slab instead of four 16-lane masked stores
    lat_ref[...] = jnp.concatenate([mu, std, logvar, z], axis=-1)

    # ---- per-row loss partials (masked out padded batch rows) ----
    kld_row = jnp.sum(-0.5 * (1.0 + logvar - mu * mu - e),
                      axis=-1, keepdims=True)          # (TB, 1)
    diff = rec - x
    rec_row = jnp.sum(diff * diff, axis=-1, keepdims=True)  # (TB, 1)
    row = (pl.program_id(0) * tile_b +
           jax.lax.broadcasted_iota(jnp.int32, (tile_b, 1), 0))
    valid = (row < batch).astype(jnp.float32)
    loss_ref[...] = jnp.concatenate([kld_row, rec_row], axis=-1) * valid


def init_params(key, input_dim, hidden_dims, latent_dim):
    """Deterministic PyTorch-style init (U(-1/sqrt(fan_in), 1/sqrt(fan_in)))."""
    def lin(k, fan_in, fan_out):
        kw, kb = jax.random.split(k)
        bound = 1.0 / (fan_in ** 0.5)
        w = jax.random.uniform(kw, (fan_in, fan_out), jnp.float32, -bound, bound)
        b = jax.random.uniform(kb, (1, fan_out), jnp.float32, -bound, bound)
        return w, b

    h1, h2 = hidden_dims
    keys = jax.random.split(key, 6)
    p = {"latent_dim": latent_dim, "hidden_dims": hidden_dims}
    # encoder: D -> h1 -> h2 -> 2*latent
    p["ew1"], p["eb1"] = lin(keys[0], input_dim, h1)
    p["eg1"], p["ebt1"] = jnp.ones((1, h1), jnp.float32), jnp.zeros((1, h1), jnp.float32)
    p["ew2"], p["eb2"] = lin(keys[1], h1, h2)
    p["eg2"], p["ebt2"] = jnp.ones((1, h2), jnp.float32), jnp.zeros((1, h2), jnp.float32)
    p["ew3"], p["eb3"] = lin(keys[2], h2, 2 * latent_dim)
    # decoder: latent -> h2 -> h1 -> D   (hidden_dims reversed)
    p["dw1"], p["db1"] = lin(keys[3], latent_dim, h2)
    p["dg1"], p["dbt1"] = jnp.ones((1, h2), jnp.float32), jnp.zeros((1, h2), jnp.float32)
    p["dw2"], p["db2"] = lin(keys[4], h2, h1)
    p["dg2"], p["dbt2"] = jnp.ones((1, h1), jnp.float32), jnp.zeros((1, h1), jnp.float32)
    p["dw3"], p["db3"] = lin(keys[5], h1, input_dim)
    return p


def _choose_tile(batch, max_tile=256):
    """Tile the batch: multiple of 8 sublanes, capped so tiles fit VMEM on v7x."""
    bp = ((batch + 7) // 8) * 8
    tb = min(max_tile, bp)
    bp = ((bp + tb - 1) // tb) * tb
    return tb, bp


def cvae_simple_forward(x_nchw, params, noise, max_tile=256):
    B = x_nchw.shape[0]
    x = x_nchw.reshape(B, -1).astype(jnp.float32)      # nn.Flatten()
    D = x.shape[1]
    Lz = params["latent_dim"]

    TB, Bp = _choose_tile(B, max_tile)
    num_tiles = Bp // TB
    if Bp != B:
        x = jnp.pad(x, ((0, Bp - B), (0, 0)))
        noise = jnp.pad(noise.astype(jnp.float32), ((0, Bp - B), (0, 0)))
    else:
        noise = noise.astype(jnp.float32)

    bf16 = jnp.bfloat16
    # split the 2*latent encoder head into mu / logvar heads; bf16 weight mats
    ew3m = params["ew3"][:, :Lz].astype(bf16)
    ew3l = params["ew3"][:, Lz:].astype(bf16)
    eb3m = params["eb3"][:, :Lz]
    eb3l = params["eb3"][:, Lz:]

    weights = [
        params["ew1"].astype(bf16), params["eb1"], params["eg1"], params["ebt1"],
        params["ew2"].astype(bf16), params["eb2"], params["eg2"], params["ebt2"],
        ew3m, eb3m, ew3l, eb3l,
        params["dw1"].astype(bf16), params["db1"], params["dg1"], params["dbt1"],
        params["dw2"].astype(bf16), params["db2"], params["dg2"], params["dbt2"],
        params["dw3"].astype(bf16), params["db3"],
    ]
    args = [x, noise] + weights

    def batch_spec(cols):
        return pl.BlockSpec((TB, cols), lambda i: (i, 0))

    def const_spec(arr):
        return pl.BlockSpec(arr.shape, lambda i: (0, 0))

    in_specs = [batch_spec(D), batch_spec(Lz)] + [const_spec(w) for w in weights]
    out_specs = (batch_spec(D), batch_spec(4 * Lz), batch_spec(2))
    out_shape = (
        jax.ShapeDtypeStruct((Bp, D), jnp.float32),        # rec
        jax.ShapeDtypeStruct((Bp, 4 * Lz), jnp.float32),   # mu|std|logvar|z
        jax.ShapeDtypeStruct((Bp, 2), jnp.float32),        # per-row kld / mse
    )

    rec_p, lat_p, loss_p = pl.pallas_call(
        functools.partial(_cvae_kernel, B, TB),
        grid=(num_tiles,),
        in_specs=in_specs,
        out_specs=out_specs,
        out_shape=out_shape,
        compiler_params=pltpu.CompilerParams(
            dimension_semantics=("parallel",),
            vmem_limit_bytes=32 * 1024 * 1024),
    )(*args)

    rec = rec_p[:B]
    lat = lat_p[:B]
    mu = lat[:, :Lz]
    std = lat[:, Lz:2 * Lz]
    logvar = lat[:, 2 * Lz:3 * Lz]
    z = lat[:, 3 * Lz:]
    loss_z = jnp.sum(loss_p[:, 0]) / B
    loss_rec = jnp.sum(loss_p[:, 1]) / B
    losses = {"z": loss_z, "rec": loss_rec, "total_loss": loss_rec + loss_z}
    return {"mu": mu, "std": std, "logvar": logvar, "z": z, "rec": rec,
            "losses": losses}


def _reference_forward(x_nchw, p, noise):
    """Pure-JAX f32 reference mirroring the PyTorch forward (eval-mode dropout)."""
    x = x_nchw.reshape(x_nchw.shape[0], -1).astype(jnp.float32)
    Lz = p["latent_dim"]

    def ln_relu(h, g, b):
        m = jnp.mean(h, -1, keepdims=True)
        v = jnp.mean((h - m) ** 2, -1, keepdims=True)
        return jnp.maximum((h - m) / jnp.sqrt(v + 1e-5) * g + b, 0.0)

    h = ln_relu(x @ p["ew1"] + p["eb1"], p["eg1"], p["ebt1"])
    h = ln_relu(h @ p["ew2"] + p["eb2"], p["eg2"], p["ebt2"])
    zls = h @ p["ew3"] + p["eb3"]
    mu, logvar = zls[:, :Lz], zls[:, Lz:]
    std = jnp.sqrt(jnp.exp(logvar) + 1e-4)
    z = mu + std * noise
    h = ln_relu(z @ p["dw1"] + p["db1"], p["dg1"], p["dbt1"])
    h = ln_relu(h @ p["dw2"] + p["db2"], p["dg2"], p["dbt2"])
    rec = h @ p["dw3"] + p["db3"]
    loss_z = jnp.mean(jnp.sum(-0.5 * (1 + logvar - mu ** 2 - jnp.exp(logvar)), -1))
    loss_rec = jnp.mean(jnp.sum((rec - x) ** 2, -1))
    return mu, z, rec, loss_z, loss_rec, loss_rec + loss_z


if __name__ == "__main__":
    B, C, H, W = 2, 4, 16, 16
    input_dim = C * H * W                      # 1024
    hidden_dims = [64, 32]
    latent_dim = 16

    key = jax.random.PRNGKey(0)
    k_x, k_n, k_p = jax.random.split(key, 3)
    x = jax.random.normal(k_x, (B, C, H, W), jnp.float32)
    noise = jax.random.uniform(k_n, (B, latent_dim), jnp.float32)  # rand_like
    params = init_params(k_p, input_dim, hidden_dims, latent_dim)

    out = cvae_simple_forward(x, params, noise)
    jax.block_until_ready(out)

    mu_ref, z_ref, rec_ref, lz_ref, lr_ref, tot_ref = _reference_forward(x, params, noise)
    # tolerances account for bf16 MXU operands (f32 accumulation) in the kernel
    tol = dict(rtol=2e-2, atol=2e-2)
    assert jnp.allclose(out["mu"], mu_ref, **tol)
    assert jnp.allclose(out["z"], z_ref, **tol)
    assert jnp.allclose(out["rec"], rec_ref, **tol)
    assert jnp.allclose(out["losses"]["z"], lz_ref, **tol)
    assert jnp.allclose(out["losses"]["rec"], lr_ref, **tol)
    assert jnp.allclose(out["losses"]["total_loss"], tot_ref, **tol)

    print("KERNEL_OK")
</pallas_src>

<mosaic_0001>
module attributes {stable_mosaic.version = 11 : i64} {
  func.func @_cvae_kernel(%arg0: i32, %arg1: memref<8x1024xf32, #tpu.memory_space<vmem>>, %arg2: memref<8x16xf32, #tpu.memory_space<vmem>>, %arg3: memref<1024x64xbf16, #tpu.memory_space<vmem>>, %arg4: memref<1x64xf32, #tpu.memory_space<vmem>>, %arg5: memref<1x64xf32, #tpu.memory_space<vmem>>, %arg6: memref<1x64xf32, #tpu.memory_space<vmem>>, %arg7: memref<64x32xbf16, #tpu.memory_space<vmem>>, %arg8: memref<1x32xf32, #tpu.memory_space<vmem>>, %arg9: memref<1x32xf32, #tpu.memory_space<vmem>>, %arg10: memref<1x32xf32, #tpu.memory_space<vmem>>, %arg11: memref<32x16xbf16, #tpu.memory_space<vmem>>, %arg12: memref<1x16xf32, #tpu.memory_space<vmem>>, %arg13: memref<32x16xbf16, #tpu.memory_space<vmem>>, %arg14: memref<1x16xf32, #tpu.memory_space<vmem>>, %arg15: memref<16x32xbf16, #tpu.memory_space<vmem>>, %arg16: memref<1x32xf32, #tpu.memory_space<vmem>>, %arg17: memref<1x32xf32, #tpu.memory_space<vmem>>, %arg18: memref<1x32xf32, #tpu.memory_space<vmem>>, %arg19: memref<32x64xbf16, #tpu.memory_space<vmem>>, %arg20: memref<1x64xf32, #tpu.memory_space<vmem>>, %arg21: memref<1x64xf32, #tpu.memory_space<vmem>>, %arg22: memref<1x64xf32, #tpu.memory_space<vmem>>, %arg23: memref<64x1024xbf16, #tpu.memory_space<vmem>>, %arg24: memref<1x1024xf32, #tpu.memory_space<vmem>>, %arg25: memref<8x1024xf32, #tpu.memory_space<vmem>>, %arg26: memref<8x64xf32, #tpu.memory_space<vmem>>, %arg27: memref<8x2xf32, #tpu.memory_space<vmem>>) attributes {dimension_semantics = [#tpu.dimension_semantics<parallel>], iteration_bounds = array<i64: 1>, scalar_prefetch = 0 : i64, scratch_operands = 0 : i64, tpu.core_type = #tpu.core_type<tc>, window_params = [{transform_indices = @transform_0, window_bounds = array<i64: 8, 1024>}, {transform_indices = @transform_1, window_bounds = array<i64: 8, 16>}, {pipeline_mode = #tpu.pipeline_mode<synchronous>, transform_indices = @transform_2, window_bounds = array<i64: 1024, 64>}, {pipeline_mode = #tpu.pipeline_mode<synchronous>, transform_indices = @transform_3, window_bounds = array<i64: 1, 64>}, {pipeline_mode = #tpu.pipeline_mode<synchronous>, transform_indices = @transform_4, window_bounds = array<i64: 1, 64>}, {pipeline_mode = #tpu.pipeline_mode<synchronous>, transform_indices = @transform_5, window_bounds = array<i64: 1, 64>}, {pipeline_mode = #tpu.pipeline_mode<synchronous>, transform_indices = @transform_6, window_bounds = array<i64: 64, 32>}, {pipeline_mode = #tpu.pipeline_mode<synchronous>, transform_indices = @transform_7, window_bounds = array<i64: 1, 32>}, {pipeline_mode = #tpu.pipeline_mode<synchronous>, transform_indices = @transform_8, window_bounds = array<i64: 1, 32>}, {pipeline_mode = #tpu.pipeline_mode<synchronous>, transform_indices = @transform_9, window_bounds = array<i64: 1, 32>}, {pipeline_mode = #tpu.pipeline_mode<synchronous>, transform_indices = @transform_10, window_bounds = array<i64: 32, 16>}, {pipeline_mode = #tpu.pipeline_mode<synchronous>, transform_indices = @transform_11, window_bounds = array<i64: 1, 16>}, {pipeline_mode = #tpu.pipeline_mode<synchronous>, transform_indices = @transform_12, window_bounds = array<i64: 32, 16>}, {pipeline_mode = #tpu.pipeline_mode<synchronous>, transform_indices = @transform_13, window_bounds = array<i64: 1, 16>}, {pipeline_mode = #tpu.pipeline_mode<synchronous>, transform_indices = @transform_14, window_bounds = array<i64: 16, 32>}, {pipeline_mode = #tpu.pipeline_mode<synchronous>, transform_indices = @transform_15, window_bounds = array<i64: 1, 32>}, {pipeline_mode = #tpu.pipeline_mode<synchronous>, transform_indices = @transform_16, window_bounds = array<i64: 1, 32>}, {pipeline_mode = #tpu.pipeline_mode<synchronous>, transform_indices = @transform_17, window_bounds = array<i64: 1, 32>}, {pipeline_mode = #tpu.pipeline_mode<synchronous>, transform_indices = @transform_18, window_bounds = array<i64: 32, 64>}, {pipeline_mode = #tpu.pipeline_mode<synchronous>, transform_indices = @transform_19, window_bounds = array<i64: 1, 64>}, {pipeline_mode = #tpu.pipeline_mode<synchronous>, transform_indices = @transform_20, window_bounds = array<i64: 1, 64>}, {pipeline_mode = #tpu.pipeline_mode<synchronous>, transform_indices = @transform_21, window_bounds = array<i64: 1, 64>}, {pipeline_mode = #tpu.pipeline_mode<synchronous>, transform_indices = @transform_22, window_bounds = array<i64: 64, 1024>}, {pipeline_mode = #tpu.pipeline_mode<synchronous>, transform_indices = @transform_23, window_bounds = array<i64: 1, 1024>}, {transform_indices = @transform_24, window_bounds = array<i64: 8, 1024>}, {transform_indices = @transform_25, window_bounds = array<i64: 8, 64>}, {transform_indices = @transform_26, window_bounds = array<i64: 8, 2>}]} {
    %c0 = arith.constant 0 : index
    %c0_0 = arith.constant 0 : index
    %0 = vector.load %arg1[%c0, %c0_0] : memref<8x1024xf32, #tpu.memory_space<vmem>>, vector<8x1024xf32>
    %1 = arith.truncf %0 : vector<8x1024xf32> to vector<8x1024xbf16>
    %c0_1 = arith.constant 0 : index
    %c0_2 = arith.constant 0 : index
    %2 = vector.load %arg3[%c0_1, %c0_2] : memref<1024x64xbf16, #tpu.memory_space<vmem>>, vector<1024x64xbf16>
    %cst = arith.constant dense<0.000000e+00> : vector<8x64xf32>
    %3 = tpu.matmul %1, %2, %cst {dimension_numbers = #tpu.dot_dimension_numbers<[1], [0], [0], [1], [0, 0, 1, 1], [], []>} : vector<8x1024xbf16>, vector<1024x64xbf16>, vector<8x64xf32> -> vector<8x64xf32>
    %c0_3 = arith.constant 0 : index
    %c0_4 = arith.constant 0 : index
    %4 = vector.load %arg4[%c0_3, %c0_4] : memref<1x64xf32, #tpu.memory_space<vmem>>, vector<1x64xf32>
    %5 = vector.broadcast %4 : vector<1x64xf32> to vector<8x64xf32>
    %6 = arith.addf %3, %5 : vector<8x64xf32>
    %cst_5 = arith.constant dense<0.000000e+00> : vector<8xf32>
    %7 = vector.multi_reduction <add>, %6, %cst_5 [1] : vector<8x64xf32> to vector<8xf32>
    %8 = vector.shape_cast %7 : vector<8xf32> to vector<8x1xf32>
    %cst_6 = arith.constant 6.400000e+01 : f32
    %9 = vector.broadcast %cst_6 : f32 to vector<8x1xf32>
    %10 = arith.divf %8, %9 : vector<8x1xf32>
    %11 = vector.broadcast %10 : vector<8x1xf32> to vector<8x64xf32>
    %12 = arith.subf %6, %11 : vector<8x64xf32>
    %13 = arith.mulf %12, %12 : vector<8x64xf32>
    %cst_7 = arith.constant dense<0.000000e+00> : vector<8xf32>
    %14 = vector.multi_reduction <add>, %13, %cst_7 [1] : vector<8x64xf32> to vector<8xf32>
    %15 = vector.shape_cast %14 : vector<8xf32> to vector<8x1xf32>
    %cst_8 = arith.constant 6.400000e+01 : f32
    %16 = vector.broadcast %cst_8 : f32 to vector<8x1xf32>
    %17 = arith.divf %15, %16 : vector<8x1xf32>
    %cst_9 = arith.constant 9.99999974E-6 : f32
    %18 = vector.broadcast %cst_9 : f32 to vector<8x1xf32>
    %19 = arith.addf %17, %18 : vector<8x1xf32>
    %20 = math.rsqrt %19 : vector<8x1xf32>
    %21 = vector.broadcast %20 : vector<8x1xf32> to vector<8x64xf32>
    %22 = arith.mulf %12, %21 : vector<8x64xf32>
    %c0_10 = arith.constant 0 : index
    %c0_11 = arith.constant 0 : index
    %23 = vector.load %arg5[%c0_10, %c0_11] : memref<1x64xf32, #tpu.memory_space<vmem>>, vector<1x64xf32>
    %24 = vector.broadcast %23 : vector<1x64xf32> to vector<8x64xf32>
    %25 = arith.mulf %22, %24 : vector<8x64xf32>
    %c0_12 = arith.constant 0 : index
    %c0_13 = arith.constant 0 : index
    %26 = vector.load %arg6[%c0_12, %c0_13] : memref<1x64xf32, #tpu.memory_space<vmem>>, vector<1x64xf32>
    %27 = vector.broadcast %26 : vector<1x64xf32> to vector<8x64xf32>
    %28 = arith.addf %25, %27 : vector<8x64xf32>
    %cst_14 = arith.constant 0.000000e+00 : f32
    %29 = vector.broadcast %cst_14 : f32 to vector<8x64xf32>
    %30 = arith.maximumf %28, %29 : vector<8x64xf32>
    %31 = arith.truncf %30 : vector<8x64xf32> to vector<8x64xbf16>
    %c0_15 = arith.constant 0 : index
    %c0_16 = arith.constant 0 : index
    %32 = vector.load %arg7[%c0_15, %c0_16] : memref<64x32xbf16, #tpu.memory_space<vmem>>, vector<64x32xbf16>
    %cst_17 = arith.constant dense<0.000000e+00> : vector<8x32xf32>
    %33 = tpu.matmul %31, %32, %cst_17 {dimension_numbers = #tpu.dot_dimension_numbers<[1], [0], [0], [1], [0, 0, 1, 1], [], []>} : vector<8x64xbf16>, vector<64x32xbf16>, vector<8x32xf32> -> vector<8x32xf32>
    %c0_18 = arith.constant 0 : index
    %c0_19 = arith.constant 0 : index
    %34 = vector.load %arg8[%c0_18, %c0_19] : memref<1x32xf32, #tpu.memory_space<vmem>>, vector<1x32xf32>
    %35 = vector.broadcast %34 : vector<1x32xf32> to vector<8x32xf32>
    %36 = arith.addf %33, %35 : vector<8x32xf32>
    %cst_20 = arith.constant dense<0.000000e+00> : vector<8xf32>
    %37 = vector.multi_reduction <add>, %36, %cst_20 [1] : vector<8x32xf32> to vector<8xf32>
    %38 = vector.shape_cast %37 : vector<8xf32> to vector<8x1xf32>
    %cst_21 = arith.constant 3.200000e+01 : f32
    %39 = vector.broadcast %cst_21 : f32 to vector<8x1xf32>
    %40 = arith.divf %38, %39 : vector<8x1xf32>
    %41 = vector.broadcast %40 : vector<8x1xf32> to vector<8x32xf32>
    %42 = arith.subf %36, %41 : vector<8x32xf32>
    %43 = arith.mulf %42, %42 : vector<8x32xf32>
    %cst_22 = arith.constant dense<0.000000e+00> : vector<8xf32>
    %44 = vector.multi_reduction <add>, %43, %cst_22 [1] : vector<8x32xf32> to vector<8xf32>
    %45 = vector.shape_cast %44 : vector<8xf32> to vector<8x1xf32>
    %cst_23 = arith.constant 3.200000e+01 : f32
    %46 = vector.broadcast %cst_23 : f32 to vector<8x1xf32>
    %47 = arith.divf %45, %46 : vector<8x1xf32>
    %cst_24 = arith.constant 9.99999974E-6 : f32
    %48 = vector.broadcast %cst_24 : f32 to vector<8x1xf32>
    %49 = arith.addf %47, %48 : vector<8x1xf32>
    %50 = math.rsqrt %49 : vector<8x1xf32>
    %51 = vector.broadcast %50 : vector<8x1xf32> to vector<8x32xf32>
    %52 = arith.mulf %42, %51 : vector<8x32xf32>
    %c0_25 = arith.constant 0 : index
    %c0_26 = arith.constant 0 : index
    %53 = vector.load %arg9[%c0_25, %c0_26] : memref<1x32xf32, #tpu.memory_space<vmem>>, vector<1x32xf32>
    %54 = vector.broadcast %53 : vector<1x32xf32> to vector<8x32xf32>
    %55 = arith.mulf %52, %54 : vector<8x32xf32>
    %c0_27 = arith.constant 0 : index
    %c0_28 = arith.constant 0 : index
    %56 = vector.load %arg10[%c0_27, %c0_28] : memref<1x32xf32, #tpu.memory_space<vmem>>, vector<1x32xf32>
    %57 = vector.broadcast %56 : vector<1x32xf32> to vector<8x32xf32>
    %58 = arith.addf %55, %57 : vector<8x32xf32>
    %cst_29 = arith.constant 0.000000e+00 : f32
    %59 = vector.broadcast %cst_29 : f32 to vector<8x32xf32>
    %60 = arith.maximumf %58, %59 : vector<8x32xf32>
    %61 = arith.truncf %60 : vector<8x32xf32> to vector<8x32xbf16>
    %c0_30 = arith.constant 0 : index
    %c0_31 = arith.constant 0 : index
    %62 = vector.load %arg11[%c0_30, %c0_31] : memref<32x16xbf16, #tpu.memory_space<vmem>>, vector<32x16xbf16>
    %cst_32 = arith.constant dense<0.000000e+00> : vector<8x16xf32>
    %63 = tpu.matmul %61, %62, %cst_32 {dimension_numbers = #tpu.dot_dimension_numbers<[1], [0], [0], [1], [0, 0, 1, 1], [], []>} : vector<8x32xbf16>, vector<32x16xbf16>, vector<8x16xf32> -> vector<8x16xf32>
    %c0_33 = arith.constant 0 : index
    %c0_34 = arith.constant 0 : index
    %64 = vector.load %arg12[%c0_33, %c0_34] : memref<1x16xf32, #tpu.memory_space<vmem>>, vector<1x16xf32>
    %65 = vector.broadcast %64 : vector<1x16xf32> to vector<8x16xf32>
    %66 = arith.addf %63, %65 : vector<8x16xf32>
    %67 = arith.truncf %60 : vector<8x32xf32> to vector<8x32xbf16>
    %c0_35 = arith.constant 0 : index
    %c0_36 = arith.constant 0 : index
    %68 = vector.load %arg13[%c0_35, %c0_36] : memref<32x16xbf16, #tpu.memory_space<vmem>>, vector<32x16xbf16>
    %cst_37 = arith.constant dense<0.000000e+00> : vector<8x16xf32>
    %69 = tpu.matmul %67, %68, %cst_37 {dimension_numbers = #tpu.dot_dimension_numbers<[1], [0], [0], [1], [0, 0, 1, 1], [], []>} : vector<8x32xbf16>, vector<32x16xbf16>, vector<8x16xf32> -> vector<8x16xf32>
    %c0_38 = arith.constant 0 : index
    %c0_39 = arith.constant 0 : index
    %70 = vector.load %arg14[%c0_38, %c0_39] : memref<1x16xf32, #tpu.memory_space<vmem>>, vector<1x16xf32>
    %71 = vector.broadcast %70 : vector<1x16xf32> to vector<8x16xf32>
    %72 = arith.addf %69, %71 : vector<8x16xf32>
    %73 = math.exp %72 : vector<8x16xf32>
    %cst_40 = arith.constant 9.99999974E-5 : f32
    %74 = vector.broadcast %cst_40 : f32 to vector<8x16xf32>
    %75 = arith.addf %73, %74 : vector<8x16xf32>
    %76 = math.sqrt %75 : vector<8x16xf32>
    %c0_41 = arith.constant 0 : index
    %c0_42 = arith.constant 0 : index
    %77 = vector.load %arg2[%c0_41, %c0_42] : memref<8x16xf32, #tpu.memory_space<vmem>>, vector<8x16xf32>
    %78 = arith.mulf %76, %77 : vector<8x16xf32>
    %79 = arith.addf %66, %78 : vector<8x16xf32>
    %80 = arith.truncf %79 : vector<8x16xf32> to vector<8x16xbf16>
    %c0_43 = arith.constant 0 : index
    %c0_44 = arith.constant 0 : index
    %81 = vector.load %arg15[%c0_43, %c0_44] : memref<16x32xbf16, #tpu.memory_space<vmem>>, vector<16x32xbf16>
    %cst_45 = arith.constant dense<0.000000e+00> : vector<8x32xf32>
    %82 = tpu.matmul %80, %81, %cst_45 {dimension_numbers = #tpu.dot_dimension_numbers<[1], [0], [0], [1], [0, 0, 1, 1], [], []>} : vector<8x16xbf16>, vector<16x32xbf16>, vector<8x32xf32> -> vector<8x32xf32>
    %c0_46 = arith.constant 0 : index
    %c0_47 = arith.constant 0 : index
    %83 = vector.load %arg16[%c0_46, %c0_47] : memref<1x32xf32, #tpu.memory_space<vmem>>, vector<1x32xf32>
    %84 = vector.broadcast %83 : vector<1x32xf32> to vector<8x32xf32>
    %85 = arith.addf %82, %84 : vector<8x32xf32>
    %cst_48 = arith.constant dense<0.000000e+00> : vector<8xf32>
    %86 = vector.multi_reduction <add>, %85, %cst_48 [1] : vector<8x32xf32> to vector<8xf32>
    %87 = vector.shape_cast %86 : vector<8xf32> to vector<8x1xf32>
    %cst_49 = arith.constant 3.200000e+01 : f32
    %88 = vector.broadcast %cst_49 : f32 to vector<8x1xf32>
    %89 = arith.divf %87, %88 : vector<8x1xf32>
    %90 = vector.broadcast %89 : vector<8x1xf32> to vector<8x32xf32>
    %91 = arith.subf %85, %90 : vector<8x32xf32>
    %92 = arith.mulf %91, %91 : vector<8x32xf32>
    %cst_50 = arith.constant dense<0.000000e+00> : vector<8xf32>
    %93 = vector.multi_reduction <add>, %92, %cst_50 [1] : vector<8x32xf32> to vector<8xf32>
    %94 = vector.shape_cast %93 : vector<8xf32> to vector<8x1xf32>
    %cst_51 = arith.constant 3.200000e+01 : f32
    %95 = vector.broadcast %cst_51 : f32 to vector<8x1xf32>
    %96 = arith.divf %94, %95 : vector<8x1xf32>
    %cst_52 = arith.constant 9.99999974E-6 : f32
    %97 = vector.broadcast %cst_52 : f32 to vector<8x1xf32>
    %98 = arith.addf %96, %97 : vector<8x1xf32>
    %99 = math.rsqrt %98 : vector<8x1xf32>
    %100 = vector.broadcast %99 : vector<8x1xf32> to vector<8x32xf32>
    %101 = arith.mulf %91, %100 : vector<8x32xf32>
    %c0_53 = arith.constant 0 : index
    %c0_54 = arith.constant 0 : index
    %102 = vector.load %arg17[%c0_53, %c0_54] : memref<1x32xf32, #tpu.memory_space<vmem>>, vector<1x32xf32>
    %103 = vector.broadcast %102 : vector<1x32xf32> to vector<8x32xf32>
    %104 = arith.mulf %101, %103 : vector<8x32xf32>
    %c0_55 = arith.constant 0 : index
    %c0_56 = arith.constant 0 : index
    %105 = vector.load %arg18[%c0_55, %c0_56] : memref<1x32xf32, #tpu.memory_space<vmem>>, vector<1x32xf32>
    %106 = vector.broadcast %105 : vector<1x32xf32> to vector<8x32xf32>
    %107 = arith.addf %104, %106 : vector<8x32xf32>
    %cst_57 = arith.constant 0.000000e+00 : f32
    %108 = vector.broadcast %cst_57 : f32 to vector<8x32xf32>
    %109 = arith.maximumf %107, %108 : vector<8x32xf32>
    %110 = arith.truncf %109 : vector<8x32xf32> to vector<8x32xbf16>
    %c0_58 = arith.constant 0 : index
    %c0_59 = arith.constant 0 : index
    %111 = vector.load %arg19[%c0_58, %c0_59] : memref<32x64xbf16, #tpu.memory_space<vmem>>, vector<32x64xbf16>
    %cst_60 = arith.constant dense<0.000000e+00> : vector<8x64xf32>
    %112 = tpu.matmul %110, %111, %cst_60 {dimension_numbers = #tpu.dot_dimension_numbers<[1], [0], [0], [1], [0, 0, 1, 1], [], []>} : vector<8x32xbf16>, vector<32x64xbf16>, vector<8x64xf32> -> vector<8x64xf32>
    %c0_61 = arith.constant 0 : index
    %c0_62 = arith.constant 0 : index
    %113 = vector.load %arg20[%c0_61, %c0_62] : memref<1x64xf32, #tpu.memory_space<vmem>>, vector<1x64xf32>
    %114 = vector.broadcast %113 : vector<1x64xf32> to vector<8x64xf32>
    %115 = arith.addf %112, %114 : vector<8x64xf32>
    %cst_63 = arith.constant dense<0.000000e+00> : vector<8xf32>
    %116 = vector.multi_reduction <add>, %115, %cst_63 [1] : vector<8x64xf32> to vector<8xf32>
    %117 = vector.shape_cast %116 : vector<8xf32> to vector<8x1xf32>
    %cst_64 = arith.constant 6.400000e+01 : f32
    %118 = vector.broadcast %cst_64 : f32 to vector<8x1xf32>
    %119 = arith.divf %117, %118 : vector<8x1xf32>
    %120 = vector.broadcast %119 : vector<8x1xf32> to vector<8x64xf32>
    %121 = arith.subf %115, %120 : vector<8x64xf32>
    %122 = arith.mulf %121, %121 : vector<8x64xf32>
    %cst_65 = arith.constant dense<0.000000e+00> : vector<8xf32>
    %123 = vector.multi_reduction <add>, %122, %cst_65 [1] : vector<8x64xf32> to vector<8xf32>
    %124 = vector.shape_cast %123 : vector<8xf32> to vector<8x1xf32>
    %cst_66 = arith.constant 6.400000e+01 : f32
    %125 = vector.broadcast %cst_66 : f32 to vector<8x1xf32>
    %126 = arith.divf %124, %125 : vector<8x1xf32>
    %cst_67 = arith.constant 9.99999974E-6 : f32
    %127 = vector.broadcast %cst_67 : f32 to vector<8x1xf32>
    %128 = arith.addf %126, %127 : vector<8x1xf32>
    %129 = math.rsqrt %128 : vector<8x1xf32>
    %130 = vector.broadcast %129 : vector<8x1xf32> to vector<8x64xf32>
    %131 = arith.mulf %121, %130 : vector<8x64xf32>
    %c0_68 = arith.constant 0 : index
    %c0_69 = arith.constant 0 : index
    %132 = vector.load %arg21[%c0_68, %c0_69] : memref<1x64xf32, #tpu.memory_space<vmem>>, vector<1x64xf32>
    %133 = vector.broadcast %132 : vector<1x64xf32> to vector<8x64xf32>
    %134 = arith.mulf %131, %133 : vector<8x64xf32>
    %c0_70 = arith.constant 0 : index
    %c0_71 = arith.constant 0 : index
    %135 = vector.load %arg22[%c0_70, %c0_71] : memref<1x64xf32, #tpu.memory_space<vmem>>, vector<1x64xf32>
    %136 = vector.broadcast %135 : vector<1x64xf32> to vector<8x64xf32>
    %137 = arith.addf %134, %136 : vector<8x64xf32>
    %cst_72 = arith.constant 0.000000e+00 : f32
    %138 = vector.broadcast %cst_72 : f32 to vector<8x64xf32>
    %139 = arith.maximumf %137, %138 : vector<8x64xf32>
    %140 = arith.truncf %139 : vector<8x64xf32> to vector<8x64xbf16>
    %c0_73 = arith.constant 0 : index
    %c0_74 = arith.constant 0 : index
    %141 = vector.load %arg23[%c0_73, %c0_74] : memref<64x1024xbf16, #tpu.memory_space<vmem>>, vector<64x1024xbf16>
    %cst_75 = arith.constant dense<0.000000e+00> : vector<8x1024xf32>
    %142 = tpu.matmul %140, %141, %cst_75 {dimension_numbers = #tpu.dot_dimension_numbers<[1], [0], [0], [1], [0, 0, 1, 1], [], []>} : vector<8x64xbf16>, vector<64x1024xbf16>, vector<8x1024xf32> -> vector<8x1024xf32>
    %c0_76 = arith.constant 0 : index
    %c0_77 = arith.constant 0 : index
    %143 = vector.load %arg24[%c0_76, %c0_77] : memref<1x1024xf32, #tpu.memory_space<vmem>>, vector<1x1024xf32>
    %144 = vector.broadcast %143 : vector<1x1024xf32> to vector<8x1024xf32>
    %145 = arith.addf %142, %144 : vector<8x1024xf32>
    %c0_78 = arith.constant 0 : index
    %c0_79 = arith.constant 0 : index
    %146 = vector.load %arg25[%c0_78, %c0_79] : memref<8x1024xf32, #tpu.memory_space<vmem>>, vector<8x1024xf32>
    tpu.vector_store %arg25[%c0_78, %c0_79], %145 {strides = array<i32>} : memref<8x1024xf32, #tpu.memory_space<vmem>>, vector<8x1024xf32>,
    %147 = tpu.concatenate %66, %76, %72, %79 in 1 : vector<8x16xf32>, vector<8x16xf32>, vector<8x16xf32>, vector<8x16xf32> -> vector<8x64xf32>
    %c0_80 = arith.constant 0 : index
    %c0_81 = arith.constant 0 : index
    %148 = vector.load %arg26[%c0_80, %c0_81] : memref<8x64xf32, #tpu.memory_space<vmem>>, vector<8x64xf32>
    tpu.vector_store %arg26[%c0_80, %c0_81], %147 {strides = array<i32>} : memref<8x64xf32, #tpu.memory_space<vmem>>, vector<8x64xf32>,
    %cst_82 = arith.constant 1.000000e+00 : f32
    %149 = vector.broadcast %cst_82 : f32 to vector<8x16xf32>
    %150 = arith.addf %149, %72 : vector<8x16xf32>
    %151 = arith.mulf %66, %66 : vector<8x16xf32>
    %152 = arith.subf %150, %151 : vector<8x16xf32>
    %153 = arith.subf %152, %73 : vector<8x16xf32>
    %cst_83 = arith.constant -5.000000e-01 : f32
    %154 = vector.broadcast %cst_83 : f32 to vector<8x16xf32>
    %155 = arith.mulf %154, %153 : vector<8x16xf32>
    %cst_84 = arith.constant dense<0.000000e+00> : vector<8xf32>
    %156 = vector.multi_reduction <add>, %155, %cst_84 [1] : vector<8x16xf32> to vector<8xf32>
    %157 = vector.shape_cast %156 : vector<8xf32> to vector<8x1xf32>
    %158 = arith.subf %145, %0 : vector<8x1024xf32>
    %159 = arith.mulf %158, %158 : vector<8x1024xf32>
    %cst_85 = arith.constant dense<0.000000e+00> : vector<8xf32>
    %160 = vector.multi_reduction <add>, %159, %cst_85 [1] : vector<8x1024xf32> to vector<8xf32>
    %161 = vector.shape_cast %160 : vector<8xf32> to vector<8x1xf32>
    %c8_i32 = arith.constant 8 : i32
    %162 = arith.muli %arg0, %c8_i32 : i32
    %163 = tpu.iota {dimensions = array<i32: 0>} : vector<8x1xi32>
    %164 = vector.broadcast %162 : i32 to vector<8x1xi32>
    %165 = arith.addi %164, %163 : vector<8x1xi32>
    %c2_i32 = arith.constant 2 : i32
    %166 = vector.broadcast %c2_i32 : i32 to vector<8x1xi32>
    %167 = arith.cmpi slt, %165, %166 : vector<8x1xi32>
    %168 = arith.extui %167 : vector<8x1xi1> to vector<8x1xi32>
    %169 = arith.sitofp %168 : vector<8x1xi32> to vector<8x1xf32>
    %170 = tpu.concatenate %157, %161 in 1 : vector<8x1xf32>, vector<8x1xf32> -> vector<8x2xf32>
    %171 = vector.broadcast %169 : vector<8x1xf32> to vector<8x2xf32>
    %172 = arith.mulf %170, %171 : vector<8x2xf32>
    %c0_86 = arith.constant 0 : index
    %c0_87 = arith.constant 0 : index
    %173 = vector.load %arg27[%c0_86, %c0_87] : memref<8x2xf32, #tpu.memory_space<vmem>>, vector<8x2xf32>
    tpu.vector_store %arg27[%c0_86, %c0_87], %172 {strides = array<i32>} : memref<8x2xf32, #tpu.memory_space<vmem>>, vector<8x2xf32>,
    return
  }
  func.func @transform_0(%arg0: i32) -> (i32, i32) {
    %c0_i32 = arith.constant 0 : i32
    %c0_i32_0 = arith.constant 0 : i32
    return %arg0, %c0_i32 : i32, i32
  }
  func.func @transform_1(%arg0: i32) -> (i32, i32) {
    %c0_i32 = arith.constant 0 : i32
    %c0_i32_0 = arith.constant 0 : i32
    return %arg0, %c0_i32 : i32, i32
  }
  func.func @transform_2(%arg0: i32) -> (i32, i32) {
    %c0_i32 = arith.constant 0 : i32
    %c0_i32_0 = arith.constant 0 : i32
    %c0_i32_1 = arith.constant 0 : i32
    return %c0_i32, %c0_i32_0 : i32, i32
  }
  func.func @transform_3(%arg0: i32) -> (i32, i32) {
    %c0_i32 = arith.constant 0 : i32
    %c0_i32_0 = arith.constant 0 : i32
    %c0_i32_1 = arith.constant 0 : i32
    return %c0_i32, %c0_i32_0 : i32, i32
  }
  func.func @transform_4(%arg0: i32) -> (i32, i32) {
    %c0_i32 = arith.constant 0 : i32
    %c0_i32_0 = arith.constant 0 : i32
    %c0_i32_1 = arith.constant 0 : i32
    return %c0_i32, %c0_i32_0 : i32, i32
  }
  func.func @transform_5(%arg0: i32) -> (i32, i32) {
    %c0_i32 = arith.constant 0 : i32
    %c0_i32_0 = arith.constant 0 : i32
    %c0_i32_1 = arith.constant 0 : i32
    return %c0_i32, %c0_i32_0 : i32, i32
  }
  func.func @transform_6(%arg0: i32) -> (i32, i32) {
    %c0_i32 = arith.constant 0 : i32
    %c0_i32_0 = arith.constant 0 : i32
    %c0_i32_1 = arith.constant 0 : i32
    return %c0_i32, %c0_i32_0 : i32, i32
  }
  func.func @transform_7(%arg0: i32) -> (i32, i32) {
    %c0_i32 = arith.constant 0 : i32
    %c0_i32_0 = arith.constant 0 : i32
    %c0_i32_1 = arith.constant 0 : i32
    return %c0_i32, %c0_i32_0 : i32, i32
  }
  func.func @transform_8(%arg0: i32) -> (i32, i32) {
    %c0_i32 = arith.constant 0 : i32
    %c0_i32_0 = arith.constant 0 : i32
    %c0_i32_1 = arith.constant 0 : i32
    return %c0_i32, %c0_i32_0 : i32, i32
  }
  func.func @transform_9(%arg0: i32) -> (i32, i32) {
    %c0_i32 = arith.constant 0 : i32
    %c0_i32_0 = arith.constant 0 : i32
    %c0_i32_1 = arith.constant 0 : i32
    return %c0_i32, %c0_i32_0 : i32, i32
  }
  func.func @transform_10(%arg0: i32) -> (i32, i32) {
    %c0_i32 = arith.constant 0 : i32
    %c0_i32_0 = arith.constant 0 : i32
    %c0_i32_1 = arith.constant 0 : i32
    return %c0_i32, %c0_i32_0 : i32, i32
  }
  func.func @transform_11(%arg0: i32) -> (i32, i32) {
    %c0_i32 = arith.constant 0 : i32
    %c0_i32_0 = arith.constant 0 : i32
    %c0_i32_1 = arith.constant 0 : i32
    return %c0_i32, %c0_i32_0 : i32, i32
  }
  func.func @transform_12(%arg0: i32) -> (i32, i32) {
    %c0_i32 = arith.constant 0 : i32
    %c0_i32_0 = arith.constant 0 : i32
    %c0_i32_1 = arith.constant 0 : i32
    return %c0_i32, %c0_i32_0 : i32, i32
  }
  func.func @transform_13(%arg0: i32) -> (i32, i32) {
    %c0_i32 = arith.constant 0 : i32
    %c0_i32_0 = arith.constant 0 : i32
    %c0_i32_1 = arith.constant 0 : i32
    return %c0_i32, %c0_i32_0 : i32, i32
  }
  func.func @transform_14(%arg0: i32) -> (i32, i32) {
    %c0_i32 = arith.constant 0 : i32
    %c0_i32_0 = arith.constant 0 : i32
    %c0_i32_1 = arith.constant 0 : i32
    return %c0_i32, %c0_i32_0 : i32, i32
  }
  func.func @transform_15(%arg0: i32) -> (i32, i32) {
    %c0_i32 = arith.constant 0 : i32
    %c0_i32_0 = arith.constant 0 : i32
    %c0_i32_1 = arith.constant 0 : i32
    return %c0_i32, %c0_i32_0 : i32, i32
  }
  func.func @transform_16(%arg0: i32) -> (i32, i32) {
    %c0_i32 = arith.constant 0 : i32
    %c0_i32_0 = arith.constant 0 : i32
    %c0_i32_1 = arith.constant 0 : i32
    return %c0_i32, %c0_i32_0 : i32, i32
  }
  func.func @transform_17(%arg0: i32) -> (i32, i32) {
    %c0_i32 = arith.constant 0 : i32
    %c0_i32_0 = arith.constant 0 : i32
    %c0_i32_1 = arith.constant 0 : i32
    return %c0_i32, %c0_i32_0 : i32, i32
  }
  func.func @transform_18(%arg0: i32) -> (i32, i32) {
    %c0_i32 = arith.constant 0 : i32
    %c0_i32_0 = arith.constant 0 : i32
    %c0_i32_1 = arith.constant 0 : i32
    return %c0_i32, %c0_i32_0 : i32, i32
  }
  func.func @transform_19(%arg0: i32) -> (i32, i32) {
    %c0_i32 = arith.constant 0 : i32
    %c0_i32_0 = arith.constant 0 : i32
    %c0_i32_1 = arith.constant 0 : i32
    return %c0_i32, %c0_i32_0 : i32, i32
  }
  func.func @transform_20(%arg0: i32) -> (i32, i32) {
    %c0_i32 = arith.constant 0 : i32
    %c0_i32_0 = arith.constant 0 : i32
    %c0_i32_1 = arith.constant 0 : i32
    return %c0_i32, %c0_i32_0 : i32, i32
  }
  func.func @transform_21(%arg0: i32) -> (i32, i32) {
    %c0_i32 = arith.constant 0 : i32
    %c0_i32_0 = arith.constant 0 : i32
    %c0_i32_1 = arith.constant 0 : i32
    return %c0_i32, %c0_i32_0 : i32, i32
  }
  func.func @transform_22(%arg0: i32) -> (i32, i32) {
    %c0_i32 = arith.constant 0 : i32
    %c0_i32_0 = arith.constant 0 : i32
    %c0_i32_1 = arith.constant 0 : i32
    return %c0_i32, %c0_i32_0 : i32, i32
  }
  func.func @transform_23(%arg0: i32) -> (i32, i32) {
    %c0_i32 = arith.constant 0 : i32
    %c0_i32_0 = arith.constant 0 : i32
    %c0_i32_1 = arith.constant 0 : i32
    return %c0_i32, %c0_i32_0 : i32, i32
  }
  func.func @transform_24(%arg0: i32) -> (i32, i32) {
    %c0_i32 = arith.constant 0 : i32
    %c0_i32_0 = arith.constant 0 : i32
    return %arg0, %c0_i32 : i32, i32
  }
  func.func @transform_25(%arg0: i32) -> (i32, i32) {
    %c0_i32 = arith.constant 0 : i32
    %c0_i32_0 = arith.constant 0 : i32
    return %arg0, %c0_i32 : i32, i32
  }
  func.func @transform_26(%arg0: i32) -> (i32, i32) {
    %c0_i32 = arith.constant 0 : i32
    %c0_i32_0 = arith.constant 0 : i32
    return %arg0, %c0_i32 : i32, i32
  }
}

</mosaic_0001>

<llo_original>
// kernel: tpu_custom_call.1
$region0: #{tpu_custom_call.1}
  #allocation0 [shape = 'u32[]', space=smem, size = 0x4, offset = 0x4, fixed_abs, tag = 'smem constant byte address 0x4 - core index']
  #allocation1 [shape = 'u32[144,128]{1,0:T(1,128)}', space=vmem, size = 0x12000, scoped, tag = 'internal scratch']
  %s0 = inlined_call_operand.vmem [shape: f32[8,1024], index: 0, kind: input, shape index: {}]
  %s1 = inlined_call_operand.vmem [shape: f32[8,16], index: 1, kind: input, shape index: {}]
  %s2 = inlined_call_operand.vmem [shape: bf16[1024,64], index: 2, kind: input, shape index: {}]
  %s3 = inlined_call_operand.vmem [shape: f32[1,64], index: 3, kind: input, shape index: {}]
  %s4 = inlined_call_operand.vmem [shape: f32[1,64], index: 4, kind: input, shape index: {}]
  %s5 = inlined_call_operand.vmem [shape: f32[1,64], index: 5, kind: input, shape index: {}]
  %s6 = inlined_call_operand.vmem [shape: bf16[64,32], index: 6, kind: input, shape index: {}]
  %s7 = inlined_call_operand.vmem [shape: f32[1,32], index: 7, kind: input, shape index: {}]
  %s8 = inlined_call_operand.vmem [shape: f32[1,32], index: 8, kind: input, shape index: {}]
  %s9 = inlined_call_operand.vmem [shape: f32[1,32], index: 9, kind: input, shape index: {}]
  %s10 = inlined_call_operand.vmem [shape: bf16[32,16], index: 10, kind: input, shape index: {}]
  %s11 = inlined_call_operand.vmem [shape: f32[1,16], index: 11, kind: input, shape index: {}]
  %s12 = inlined_call_operand.vmem [shape: bf16[32,16], index: 12, kind: input, shape index: {}]
  %s13 = inlined_call_operand.vmem [shape: f32[1,16], index: 13, kind: input, shape index: {}]
  %s14 = inlined_call_operand.vmem [shape: bf16[16,32], index: 14, kind: input, shape index: {}]
  %s15 = inlined_call_operand.vmem [shape: f32[1,32], index: 15, kind: input, shape index: {}]
  %s16 = inlined_call_operand.vmem [shape: f32[1,32], index: 16, kind: input, shape index: {}]
  %s17 = inlined_call_operand.vmem [shape: f32[1,32], index: 17, kind: input, shape index: {}]
  %s18 = inlined_call_operand.vmem [shape: bf16[32,64], index: 18, kind: input, shape index: {}]
  %s19 = inlined_call_operand.vmem [shape: f32[1,64], index: 19, kind: input, shape index: {}]
  %s20 = inlined_call_operand.vmem [shape: f32[1,64], index: 20, kind: input, shape index: {}]
  %s21 = inlined_call_operand.vmem [shape: f32[1,64], index: 21, kind: input, shape index: {}]
  %s22 = inlined_call_operand.vmem [shape: bf16[64,1024], index: 22, kind: input, shape index: {}]
  %s23 = inlined_call_operand.vmem [shape: f32[1,1024], index: 23, kind: input, shape index: {}]
  %s24 = inlined_call_operand.hbm [shape: f32[8,1024], index: 24, kind: output, shape index: {0}]
  %s25 = inlined_call_operand.hbm [shape: f32[8,64], index: 25, kind: output, shape index: {1}]
  %s26 = inlined_call_operand.vmem [shape: f32[8,2], index: 26, kind: output, shape index: {2}]
  %27 = xla_tuple %s24, %s25, %s26
  %s28 = sld [smem:[#allocation0]]
  $region122: #{tpu_custom_call.1} parent=0
    _
  %s30 = ssub.s32 1, %s28
  %s31 = scalar_select 0, %s30, %s28
  $region1: #{tpu_custom_call.1} parent=0
    #allocation2 [shape = 'u8[32768]{0}', space=vmem, size = 0x8000, scoped, tag = 'output window, operand 0, single buffered']
    #allocation3 [shape = 's32[1]{0}', space=sflag, size = 0x4, scoped, tag = 'scoped memory for tpu_custom_call.1']
    #allocation4 [shape = 'u8[4096]{0}', space=vmem, size = 0x1000, scoped, tag = 'output window, operand 1, single buffered']
    #allocation5 [shape = 's32[1]{0}', space=sflag, size = 0x4, scoped, tag = 'scoped memory for tpu_custom_call.1']
    %32 = vsyncpa [#allocation3], 0
    %33 = vsyncpa [#allocation5], 0
    // Predicated region
    $region2: #{tpu_custom_call.1} parent=1 // pred_check
      _
    $region3: #{tpu_custom_call.1} parent=1 // pred_check_branch
      %35 = sbr.rel (0) target = $region5
    $region4: #{tpu_custom_call.1} parent=1 // pred_region
      _
    $region5: #{tpu_custom_call.1} parent=1 // pred_fallthru
      _
    // Predicated region
    $region6: #{tpu_custom_call.1} parent=1 // pred_check
      _
    $region7: #{tpu_custom_call.1} parent=1 // pred_check_branch
      %37 = sbr.rel (0) target = $region9
    $region8: #{tpu_custom_call.1} parent=1 // pred_region
      _
    $region9: #{tpu_custom_call.1} parent=1 // pred_fallthru
      _
    // Predicated region
    $region10: #{tpu_custom_call.1} parent=1 // pred_check
      _
    $region11: #{tpu_custom_call.1} parent=1 // pred_check_branch
      %39 = sbr.rel (0) target = $region13
    $region12: #{tpu_custom_call.1} parent=1 // pred_region
      _
    $region13: #{tpu_custom_call.1} parent=1 // pred_fallthru
      _
    // Predicated region
    $region14: #{tpu_custom_call.1} parent=1 // pred_check
      _
    $region15: #{tpu_custom_call.1} parent=1 // pred_check_branch
      %41 = sbr.rel (0) target = $region17
    $region16: #{tpu_custom_call.1} parent=1 // pred_region
      _
    $region17: #{tpu_custom_call.1} parent=1 // pred_fallthru
      _
    // Predicated region
    $region18: #{tpu_custom_call.1} parent=1 // pred_check
      _
    $region19: #{tpu_custom_call.1} parent=1 // pred_check_branch
      %43 = sbr.rel (0) target = $region21
    $region20: #{tpu_custom_call.1} parent=1 // pred_region
      _
    $region21: #{tpu_custom_call.1} parent=1 // pred_fallthru
      _
    // Predicated region
    $region22: #{tpu_custom_call.1} parent=1 // pred_check
      _
    $region23: #{tpu_custom_call.1} parent=1 // pred_check_branch
      %45 = sbr.rel (0) target = $region25
    $region24: #{tpu_custom_call.1} parent=1 // pred_region
      _
    $region25: #{tpu_custom_call.1} parent=1 // pred_fallthru
      _
    // Predicated region
    $region26: #{tpu_custom_call.1} parent=1 // pred_check
      _
    $region27: #{tpu_custom_call.1} parent=1 // pred_check_branch
      %47 = sbr.rel (0) target = $region29
    $region28: #{tpu_custom_call.1} parent=1 // pred_region
      _
    $region29: #{tpu_custom_call.1} parent=1 // pred_fallthru
      _
    // Predicated region
    $region30: #{tpu_custom_call.1} parent=1 // pred_check
      _
    $region31: #{tpu_custom_call.1} parent=1 // pred_check_branch
      %49 = sbr.rel (0) target = $region33
    $region32: #{tpu_custom_call.1} parent=1 // pred_region
      _
    $region33: #{tpu_custom_call.1} parent=1 // pred_fallthru
      _
    // Predicated region
    $region34: #{tpu_custom_call.1} parent=1 // pred_check
      _
    $region35: #{tpu_custom_call.1} parent=1 // pred_check_branch
      %51 = sbr.rel (0) target = $region37
    $region36: #{tpu_custom_call.1} parent=1 // pred_region
      _
    $region37: #{tpu_custom_call.1} parent=1 // pred_fallthru
      _
    // Predicated region
    $region38: #{tpu_custom_call.1} parent=1 // pred_check
      _
    $region39: #{tpu_custom_call.1} parent=1 // pred_check_branch
      %53 = sbr.rel (0) target = $region41
    $region40: #{tpu_custom_call.1} parent=1 // pred_region
      _
    $region41: #{tpu_custom_call.1} parent=1 // pred_fallthru
      _
    // Predicated region
    $region42: #{tpu_custom_call.1} parent=1 // pred_check
      _
    $region43: #{tpu_custom_call.1} parent=1 // pred_check_branch
      %55 = sbr.rel (0) target = $region45
    $region44: #{tpu_custom_call.1} parent=1 // pred_region
      _
    $region45: #{tpu_custom_call.1} parent=1 // pred_fallthru
      _
    // Predicated region
    $region46: #{tpu_custom_call.1} parent=1 // pred_check
      _
    $region47: #{tpu_custom_call.1} parent=1 // pred_check_branch
      %57 = sbr.rel (0) target = $region49
    $region48: #{tpu_custom_call.1} parent=1 // pred_region
      _
    $region49: #{tpu_custom_call.1} parent=1 // pred_fallthru
      _
    // Predicated region
    $region50: #{tpu_custom_call.1} parent=1 // pred_check
      _
    $region51: #{tpu_custom_call.1} parent=1 // pred_check_branch
      %59 = sbr.rel (0) target = $region53
    $region52: #{tpu_custom_call.1} parent=1 // pred_region
      _
    $region53: #{tpu_custom_call.1} parent=1 // pred_fallthru
      _
    // Predicated region
    $region54: #{tpu_custom_call.1} parent=1 // pred_check
      _
    $region55: #{tpu_custom_call.1} parent=1 // pred_check_branch
      %61 = sbr.rel (0) target = $region57
    $region56: #{tpu_custom_call.1} parent=1 // pred_region
      _
    $region57: #{tpu_custom_call.1} parent=1 // pred_fallthru
      _
    // Predicated region
    $region58: #{tpu_custom_call.1} parent=1 // pred_check
      _
    $region59: #{tpu_custom_call.1} parent=1 // pred_check_branch
      %63 = sbr.rel (0) target = $region61
    $region60: #{tpu_custom_call.1} parent=1 // pred_region
      _
    $region61: #{tpu_custom_call.1} parent=1 // pred_fallthru
      _
    // Predicated region
    $region62: #{tpu_custom_call.1} parent=1 // pred_check
      _
    $region63: #{tpu_custom_call.1} parent=1 // pred_check_branch
      %65 = sbr.rel (0) target = $region65
    $region64: #{tpu_custom_call.1} parent=1 // pred_region
      _
    $region65: #{tpu_custom_call.1} parent=1 // pred_fallthru
      _
    // Predicated region
    $region66: #{tpu_custom_call.1} parent=1 // pred_check
      _
    $region67: #{tpu_custom_call.1} parent=1 // pred_check_branch
      %67 = sbr.rel (0) target = $region69
    $region68: #{tpu_custom_call.1} parent=1 // pred_region
      _
    $region69: #{tpu_custom_call.1} parent=1 // pred_fallthru
      _
    // Predicated region
    $region70: #{tpu_custom_call.1} parent=1 // pred_check
      _
    $region71: #{tpu_custom_call.1} parent=1 // pred_check_branch
      %69 = sbr.rel (0) target = $region73
    $region72: #{tpu_custom_call.1} parent=1 // pred_region
      _
    $region73: #{tpu_custom_call.1} parent=1 // pred_fallthru
      _
    // Predicated region
    $region74: #{tpu_custom_call.1} parent=1 // pred_check
      _
    $region75: #{tpu_custom_call.1} parent=1 // pred_check_branch
      %71 = sbr.rel (0) target = $region77
    $region76: #{tpu_custom_call.1} parent=1 // pred_region
      _
    $region77: #{tpu_custom_call.1} parent=1 // pred_fallthru
      _
    // Predicated region
    $region78: #{tpu_custom_call.1} parent=1 // pred_check
      _
    $region79: #{tpu_custom_call.1} parent=1 // pred_check_branch
      %73 = sbr.rel (0) target = $region81
    $region80: #{tpu_custom_call.1} parent=1 // pred_region
      _
    $region81: #{tpu_custom_call.1} parent=1 // pred_fallthru
      _
    // Predicated region
    $region82: #{tpu_custom_call.1} parent=1 // pred_check
      _
    $region83: #{tpu_custom_call.1} parent=1 // pred_check_branch
      %75 = sbr.rel (0) target = $region85
    $region84: #{tpu_custom_call.1} parent=1 // pred_region
      _
    $region85: #{tpu_custom_call.1} parent=1 // pred_fallthru
      _
    // Predicated region
    $region86: #{tpu_custom_call.1} parent=1 // pred_check
      _
    $region87: #{tpu_custom_call.1} parent=1 // pred_check_branch
      %77 = sbr.rel (0) target = $region89
    $region88: #{tpu_custom_call.1} parent=1 // pred_region
      _
    $region89: #{tpu_custom_call.1} parent=1 // pred_fallthru
      _
    // Predicated region
    $region90: #{tpu_custom_call.1} parent=1 // pred_check
      _
    $region91: #{tpu_custom_call.1} parent=1 // pred_check_branch
      %79 = sbr.rel (0) target = $region93
    $region92: #{tpu_custom_call.1} parent=1 // pred_region
      _
    $region93: #{tpu_custom_call.1} parent=1 // pred_fallthru
      _
    // Predicated region
    $region94: #{tpu_custom_call.1} parent=1 // pred_check
      _
    $region95: #{tpu_custom_call.1} parent=1 // pred_check_branch
      %81 = sbr.rel (0) target = $region97
    $region96: #{tpu_custom_call.1} parent=1 // pred_region
      _
    $region97: #{tpu_custom_call.1} parent=1 // pred_fallthru
      _
    %v83 = vld [vmem:[%s0] sm:$0xff]
    %v84 = vld [vmem:[%s0 + $0x8] sm:$0xff]
    %v85 = vld [vmem:[%s0 + $0x10] sm:$0xff]
    %v86 = vld [vmem:[%s0 + $0x18] sm:$0xff]
    %v87 = vld [vmem:[%s0 + $0x20] sm:$0xff]
    %v88 = vld [vmem:[%s0 + $0x28] sm:$0xff]
    %v89 = vld [vmem:[%s0 + $0x30] sm:$0xff]
    %v90 = vld [vmem:[%s0 + $0x38] sm:$0xff]
    %v91 = vpack.c.bf16 %v83, %v83
    %v92 = vpack.c.bf16 %v84, %v84
    %v93 = vpack.c.bf16 %v85, %v85
    %v94 = vpack.c.bf16 %v86, %v86
    %v95 = vpack.c.bf16 %v87, %v87
    %v96 = vpack.c.bf16 %v88, %v88
    %v97 = vpack.c.bf16 %v89, %v89
    %v98 = vpack.c.bf16 %v90, %v90
    %v99 = vld [vmem:[%s2] sm:$0xf]
    %v100 = vld [vmem:[%s2 + $0x4] sm:$0xf]
    %v101 = vld [vmem:[%s2 + $0x8] sm:$0xf]
    %v102 = vld [vmem:[%s2 + $0xc] sm:$0xf]
    %v103 = vld [vmem:[%s2 + $0x10] sm:$0xf]
    %v104 = vld [vmem:[%s2 + $0x14] sm:$0xf]
    %v105 = vld [vmem:[%s2 + $0x18] sm:$0xf]
    %v106 = vld [vmem:[%s2 + $0x1c] sm:$0xf]
    %v107 = vld [vmem:[%s2 + $0x20] sm:$0xf]
    %v108 = vld [vmem:[%s2 + $0x24] sm:$0xf]
    %v109 = vld [vmem:[%s2 + $0x28] sm:$0xf]
    %v110 = vld [vmem:[%s2 + $0x2c] sm:$0xf]
    %v111 = vld [vmem:[%s2 + $0x30] sm:$0xf]
    %v112 = vld [vmem:[%s2 + $0x34] sm:$0xf]
    %v113 = vld [vmem:[%s2 + $0x38] sm:$0xf]
    %v114 = vld [vmem:[%s2 + $0x3c] sm:$0xf]
    %v115 = vld [vmem:[%s2 + $0x40] sm:$0xf]
    %v116 = vld [vmem:[%s2 + $0x44] sm:$0xf]
    %v117 = vld [vmem:[%s2 + $0x48] sm:$0xf]
    %v118 = vld [vmem:[%s2 + $0x4c] sm:$0xf]
    %v119 = vld [vmem:[%s2 + $0x50] sm:$0xf]
    %v120 = vld [vmem:[%s2 + $0x54] sm:$0xf]
    %v121 = vld [vmem:[%s2 + $0x58] sm:$0xf]
    %v122 = vld [vmem:[%s2 + $0x5c] sm:$0xf]
    %v123 = vld [vmem:[%s2 + $0x60] sm:$0xf]
    %v124 = vld [vmem:[%s2 + $0x64] sm:$0xf]
    %v125 = vld [vmem:[%s2 + $0x68] sm:$0xf]
    %v126 = vld [vmem:[%s2 + $0x6c] sm:$0xf]
    %v127 = vld [vmem:[%s2 + $0x70] sm:$0xf]
    %v128 = vld [vmem:[%s2 + $0x74] sm:$0xf]
    %v129 = vld [vmem:[%s2 + $0x78] sm:$0xf]
    %v130 = vld [vmem:[%s2 + $0x7c] sm:$0xf]
    %v131 = vld [vmem:[%s2 + $0x80] sm:$0xf]
    %v132 = vld [vmem:[%s2 + $0x84] sm:$0xf]
    %v133 = vld [vmem:[%s2 + $0x88] sm:$0xf]
    %v134 = vld [vmem:[%s2 + $0x8c] sm:$0xf]
    %v135 = vld [vmem:[%s2 + $0x90] sm:$0xf]
    %v136 = vld [vmem:[%s2 + $0x94] sm:$0xf]
    %v137 = vld [vmem:[%s2 + $0x98] sm:$0xf]
    %v138 = vld [vmem:[%s2 + $0x9c] sm:$0xf]
    %v139 = vld [vmem:[%s2 + $0xa0] sm:$0xf]
    %v140 = vld [vmem:[%s2 + $0xa4] sm:$0xf]
    %v141 = vld [vmem:[%s2 + $0xa8] sm:$0xf]
    %v142 = vld [vmem:[%s2 + $0xac] sm:$0xf]
    %v143 = vld [vmem:[%s2 + $0xb0] sm:$0xf]
    %v144 = vld [vmem:[%s2 + $0xb4] sm:$0xf]
    %v145 = vld [vmem:[%s2 + $0xb8] sm:$0xf]
    %v146 = vld [vmem:[%s2 + $0xbc] sm:$0xf]
    %v147 = vld [vmem:[%s2 + $0xc0] sm:$0xf]
    %v148 = vld [vmem:[%s2 + $0xc4] sm:$0xf]
    %v149 = vld [vmem:[%s2 + $0xc8] sm:$0xf]
    %v150 = vld [vmem:[%s2 + $0xcc] sm:$0xf]
    %v151 = vld [vmem:[%s2 + $0xd0] sm:$0xf]
    %v152 = vld [vmem:[%s2 + $0xd4] sm:$0xf]
    %v153 = vld [vmem:[%s2 + $0xd8] sm:$0xf]
    %v154 = vld [vmem:[%s2 + $0xdc] sm:$0xf]
    %v155 = vld [vmem:[%s2 + $0xe0] sm:$0xf]
    %v156 = vld [vmem:[%s2 + $0xe4] sm:$0xf]
    %v157 = vld [vmem:[%s2 + $0xe8] sm:$0xf]
    %v158 = vld [vmem:[%s2 + $0xec] sm:$0xf]
    %v159 = vld [vmem:[%s2 + $0xf0] sm:$0xf]
    %v160 = vld [vmem:[%s2 + $0xf4] sm:$0xf]
    %v161 = vld [vmem:[%s2 + $0xf8] sm:$0xf]
    %v162 = vld [vmem:[%s2 + $0xfc] sm:$0xf]
    %v163 = vld [vmem:[%s2 + $0x100] sm:$0xf]
    %v164 = vld [vmem:[%s2 + $0x104] sm:$0xf]
    %v165 = vld [vmem:[%s2 + $0x108] sm:$0xf]
    %v166 = vld [vmem:[%s2 + $0x10c] sm:$0xf]
    %v167 = vld [vmem:[%s2 + $0x110] sm:$0xf]
    %v168 = vld [vmem:[%s2 + $0x114] sm:$0xf]
    %v169 = vld [vmem:[%s2 + $0x118] sm:$0xf]
    %v170 = vld [vmem:[%s2 + $0x11c] sm:$0xf]
    %v171 = vld [vmem:[%s2 + $0x120] sm:$0xf]
    %v172 = vld [vmem:[%s2 + $0x124] sm:$0xf]
    %v173 = vld [vmem:[%s2 + $0x128] sm:$0xf]
    %v174 = vld [vmem:[%s2 + $0x12c] sm:$0xf]
    %v175 = vld [vmem:[%s2 + $0x130] sm:$0xf]
    %v176 = vld [vmem:[%s2 + $0x134] sm:$0xf]
    %v177 = vld [vmem:[%s2 + $0x138] sm:$0xf]
    %v178 = vld [vmem:[%s2 + $0x13c] sm:$0xf]
    %v179 = vld [vmem:[%s2 + $0x140] sm:$0xf]
    %v180 = vld [vmem:[%s2 + $0x144] sm:$0xf]
    %v181 = vld [vmem:[%s2 + $0x148] sm:$0xf]
    %v182 = vld [vmem:[%s2 + $0x14c] sm:$0xf]
    %v183 = vld [vmem:[%s2 + $0x150] sm:$0xf]
    %v184 = vld [vmem:[%s2 + $0x154] sm:$0xf]
    %v185 = vld [vmem:[%s2 + $0x158] sm:$0xf]
    %v186 = vld [vmem:[%s2 + $0x15c] sm:$0xf]
    %v187 = vld [vmem:[%s2 + $0x160] sm:$0xf]
    %v188 = vld [vmem:[%s2 + $0x164] sm:$0xf]
    %v189 = vld [vmem:[%s2 + $0x168] sm:$0xf]
    %v190 = vld [vmem:[%s2 + $0x16c] sm:$0xf]
    %v191 = vld [vmem:[%s2 + $0x170] sm:$0xf]
    %v192 = vld [vmem:[%s2 + $0x174] sm:$0xf]
    %v193 = vld [vmem:[%s2 + $0x178] sm:$0xf]
    %v194 = vld [vmem:[%s2 + $0x17c] sm:$0xf]
    %v195 = vld [vmem:[%s2 + $0x180] sm:$0xf]
    %v196 = vld [vmem:[%s2 + $0x184] sm:$0xf]
    %v197 = vld [vmem:[%s2 + $0x188] sm:$0xf]
    %v198 = vld [vmem:[%s2 + $0x18c] sm:$0xf]
    %v199 = vld [vmem:[%s2 + $0x190] sm:$0xf]
    %v200 = vld [vmem:[%s2 + $0x194] sm:$0xf]
    %v201 = vld [vmem:[%s2 + $0x198] sm:$0xf]
    %v202 = vld [vmem:[%s2 + $0x19c] sm:$0xf]
    %v203 = vld [vmem:[%s2 + $0x1a0] sm:$0xf]
    %v204 = vld [vmem:[%s2 + $0x1a4] sm:$0xf]
    %v205 = vld [vmem:[%s2 + $0x1a8] sm:$0xf]
    %v206 = vld [vmem:[%s2 + $0x1ac] sm:$0xf]
    %v207 = vld [vmem:[%s2 + $0x1b0] sm:$0xf]
    %v208 = vld [vmem:[%s2 + $0x1b4] sm:$0xf]
    %v209 = vld [vmem:[%s2 + $0x1b8] sm:$0xf]
    %v210 = vld [vmem:[%s2 + $0x1bc] sm:$0xf]
    %v211 = vld [vmem:[%s2 + $0x1c0] sm:$0xf]
    %v212 = vld [vmem:[%s2 + $0x1c4] sm:$0xf]
    %v213 = vld [vmem:[%s2 + $0x1c8] sm:$0xf]
    %v214 = vld [vmem:[%s2 + $0x1cc] sm:$0xf]
    %v215 = vld [vmem:[%s2 + $0x1d0] sm:$0xf]
    %v216 = vld [vmem:[%s2 + $0x1d4] sm:$0xf]
    %v217 = vld [vmem:[%s2 + $0x1d8] sm:$0xf]
    %v218 = vld [vmem:[%s2 + $0x1dc] sm:$0xf]
    %v219 = vld [vmem:[%s2 + $0x1e0] sm:$0xf]
    %v220 = vld [vmem:[%s2 + $0x1e4] sm:$0xf]
    %v221 = vld [vmem:[%s2 + $0x1e8] sm:$0xf]
    %v222 = vld [vmem:[%s2 + $0x1ec] sm:$0xf]
    %v223 = vld [vmem:[%s2 + $0x1f0] sm:$0xf]
    %v224 = vld [vmem:[%s2 + $0x1f4] sm:$0xf]
    %v225 = vld [vmem:[%s2 + $0x1f8] sm:$0xf]
    %v226 = vld [vmem:[%s2 + $0x1fc] sm:$0xf]
    %v227 = vld [vmem:[%s3] sm:$0x1]
    %v229 = vlaneseq
    %v230 = vshrl.u32 %v229, 7
    %v231 = vsub.s32 0, %v230
    %v232 = vrot.slane %v227, %v231
    %v362 = vunpack.c.l.b16 %v99
    %v363 = vunpack.c.l.b16 %v100
    %v364 = vunpack.c.l.b16 %v101
    %v365 = vunpack.c.l.b16 %v102
    %v366 = vunpack.c.l.b16 %v103
    %v367 = vunpack.c.l.b16 %v104
    %v368 = vunpack.c.l.b16 %v105
    %v369 = vunpack.c.l.b16 %v106
    %v370 = vunpack.c.l.b16 %v107
    %v371 = vunpack.c.l.b16 %v108
    %v372 = vunpack.c.l.b16 %v109
    %v373 = vunpack.c.l.b16 %v110
    %v374 = vunpack.c.l.b16 %v111
    %v375 = vunpack.c.l.b16 %v112
    %v376 = vunpack.c.l.b16 %v113
    %v377 = vunpack.c.l.b16 %v114
    %v378 = vunpack.c.l.b16 %v115
    %v379 = vunpack.c.l.b16 %v116
    %v380 = vunpack.c.l.b16 %v117
    %v381 = vunpack.c.l.b16 %v118
    %v382 = vunpack.c.l.b16 %v119
    %v383 = vunpack.c.l.b16 %v120
    %v384 = vunpack.c.l.b16 %v121
    %v385 = vunpack.c.l.b16 %v122
    %v386 = vunpack.c.l.b16 %v123
    %v387 = vunpack.c.l.b16 %v124
    %v388 = vunpack.c.l.b16 %v125
    %v389 = vunpack.c.l.b16 %v126
    %v390 = vunpack.c.l.b16 %v127
    %v391 = vunpack.c.l.b16 %v128
    %v392 = vunpack.c.l.b16 %v129
    %v393 = vunpack.c.l.b16 %v130
    %v394 = vunpack.c.l.b16 %v131
    %v395 = vunpack.c.l.b16 %v132
    %v396 = vunpack.c.l.b16 %v133
    %v397 = vunpack.c.l.b16 %v134
    %v398 = vunpack.c.l.b16 %v135
    %v399 = vunpack.c.l.b16 %v136
    %v400 = vunpack.c.l.b16 %v137
    %v401 = vunpack.c.l.b16 %v138
    %v402 = vunpack.c.l.b16 %v139
    %v403 = vunpack.c.l.b16 %v140
    %v404 = vunpack.c.l.b16 %v141
    %v405 = vunpack.c.l.b16 %v142
    %v406 = vunpack.c.l.b16 %v143
    %v407 = vunpack.c.l.b16 %v144
    %v408 = vunpack.c.l.b16 %v145
    %v409 = vunpack.c.l.b16 %v146
    %v410 = vunpack.c.l.b16 %v147
    %v411 = vunpack.c.l.b16 %v148
    %v412 = vunpack.c.l.b16 %v149
    %v413 = vunpack.c.l.b16 %v150
    %v414 = vunpack.c.l.b16 %v151
    %v415 = vunpack.c.l.b16 %v152
    %v416 = vunpack.c.l.b16 %v153
    %v417 = vunpack.c.l.b16 %v154
    %v418 = vunpack.c.l.b16 %v155
    %v419 = vunpack.c.l.b16 %v156
    %v420 = vunpack.c.l.b16 %v157
    %v421 = vunpack.c.l.b16 %v158
    %v422 = vunpack.c.l.b16 %v159
    %v423 = vunpack.c.l.b16 %v160
    %v424 = vunpack.c.l.b16 %v161
    %v425 = vunpack.c.l.b16 %v162
    %v426 = vunpack.c.l.b16 %v163
    %v427 = vunpack.c.l.b16 %v164
    %v428 = vunpack.c.l.b16 %v165
    %v429 = vunpack.c.l.b16 %v166
    %v430 = vunpack.c.l.b16 %v167
    %v431 = vunpack.c.l.b16 %v168
    %v432 = vunpack.c.l.b16 %v169
    %v433 = vunpack.c.l.b16 %v170
    %v434 = vunpack.c.l.b16 %v171
    %v435 = vunpack.c.l.b16 %v172
    %v436 = vunpack.c.l.b16 %v173
    %v437 = vunpack.c.l.b16 %v174
    %v438 = vunpack.c.l.b16 %v175
    %v439 = vunpack.c.l.b16 %v176
    %v440 = vunpack.c.l.b16 %v177
    %v441 = vunpack.c.l.b16 %v178
    %v442 = vunpack.c.l.b16 %v179
    %v443 = vunpack.c.l.b16 %v180
    %v444 = vunpack.c.l.b16 %v181
    %v445 = vunpack.c.l.b16 %v182
    %v446 = vunpack.c.l.b16 %v183
    %v447 = vunpack.c.l.b16 %v184
    %v448 = vunpack.c.l.b16 %v185
    %v449 = vunpack.c.l.b16 %v186
    %v450 = vunpack.c.l.b16 %v187
    %v451 = vunpack.c.l.b16 %v188
    %v452 = vunpack.c.l.b16 %v189
    %v453 = vunpack.c.l.b16 %v190
    %v454 = vunpack.c.l.b16 %v191
    %v455 = vunpack.c.l.b16 %v192
    %v456 = vunpack.c.l.b16 %v193
    %v457 = vunpack.c.l.b16 %v194
    %v458 = vunpack.c.l.b16 %v195
    %v459 = vunpack.c.l.b16 %v196
    %v460 = vunpack.c.l.b16 %v197
    %v461 = vunpack.c.l.b16 %v198
    %v462 = vunpack.c.l.b16 %v199
    %v463 = vunpack.c.l.b16 %v200
    %v464 = vunpack.c.l.b16 %v201
    %v465 = vunpack.c.l.b16 %v202
    %v466 = vunpack.c.l.b16 %v203
    %v467 = vunpack.c.l.b16 %v204
    %v468 = vunpack.c.l.b16 %v205
    %v469 = vunpack.c.l.b16 %v206
    %v470 = vunpack.c.l.b16 %v207
    %v471 = vunpack.c.l.b16 %v208
    %v472 = vunpack.c.l.b16 %v209
    %v473 = vunpack.c.l.b16 %v210
    %v474 = vunpack.c.l.b16 %v211
    %v475 = vunpack.c.l.b16 %v212
    %v476 = vunpack.c.l.b16 %v213
    %v477 = vunpack.c.l.b16 %v214
    %v478 = vunpack.c.l.b16 %v215
    %v479 = vunpack.c.l.b16 %v216
    %v480 = vunpack.c.l.b16 %v217
    %v481 = vunpack.c.l.b16 %v218
    %v482 = vunpack.c.l.b16 %v219
    %v483 = vunpack.c.l.b16 %v220
    %v484 = vunpack.c.l.b16 %v221
    %v485 = vunpack.c.l.b16 %v222
    %v486 = vunpack.c.l.b16 %v223
    %v487 = vunpack.c.l.b16 %v224
    %v488 = vunpack.c.l.b16 %v225
    %v489 = vunpack.c.l.b16 %v226
    %v490 = vpack.c.b16 %v363, %v362
    %v491 = vpack.c.b16 %v365, %v364
    %v492 = vpack.c.b16 %v367, %v366
    %v493 = vpack.c.b16 %v369, %v368
    %v494 = vpack.c.b16 %v371, %v370
    %v495 = vpack.c.b16 %v373, %v372
    %v496 = vpack.c.b16 %v375, %v374
    %v497 = vpack.c.b16 %v377, %v376
    %v498 = vpack.c.b16 %v379, %v378
    %v499 = vpack.c.b16 %v381, %v380
    %v500 = vpack.c.b16 %v383, %v382
    %v501 = vpack.c.b16 %v385, %v384
    %v502 = vpack.c.b16 %v387, %v386
    %v503 = vpack.c.b16 %v389, %v388
    %v504 = vpack.c.b16 %v391, %v390
    %v505 = vpack.c.b16 %v393, %v392
    %v506 = vpack.c.b16 %v395, %v394
    %v507 = vpack.c.b16 %v397, %v396
    %v508 = vpack.c.b16 %v399, %v398
    %v509 = vpack.c.b16 %v401, %v400
    %v510 = vpack.c.b16 %v403, %v402
    %v511 = vpack.c.b16 %v405, %v404
    %v512 = vpack.c.b16 %v407, %v406
    %v513 = vpack.c.b16 %v409, %v408
    %v514 = vpack.c.b16 %v411, %v410
    %v515 = vpack.c.b16 %v413, %v412
    %v516 = vpack.c.b16 %v415, %v414
    %v517 = vpack.c.b16 %v417, %v416
    %v518 = vpack.c.b16 %v419, %v418
    %v519 = vpack.c.b16 %v421, %v420
    %v520 = vpack.c.b16 %v423, %v422
    %v521 = vpack.c.b16 %v425, %v424
    %v522 = vpack.c.b16 %v427, %v426
    %v523 = vpack.c.b16 %v429, %v428
    %v524 = vpack.c.b16 %v431, %v430
    %v525 = vpack.c.b16 %v433, %v432
    %v526 = vpack.c.b16 %v435, %v434
    %v527 = vpack.c.b16 %v437, %v436
    %v528 = vpack.c.b16 %v439, %v438
    %v529 = vpack.c.b16 %v441, %v440
    %v530 = vpack.c.b16 %v443, %v442
    %v531 = vpack.c.b16 %v445, %v444
    %v532 = vpack.c.b16 %v447, %v446
    %v533 = vpack.c.b16 %v449, %v448
    %v534 = vpack.c.b16 %v451, %v450
    %v535 = vpack.c.b16 %v453, %v452
    %v536 = vpack.c.b16 %v455, %v454
    %v537 = vpack.c.b16 %v457, %v456
    %v538 = vpack.c.b16 %v459, %v458
    %v539 = vpack.c.b16 %v461, %v460
    %v540 = vpack.c.b16 %v463, %v462
    %v541 = vpack.c.b16 %v465, %v464
    %v542 = vpack.c.b16 %v467, %v466
    %v543 = vpack.c.b16 %v469, %v468
    %v544 = vpack.c.b16 %v471, %v470
    %v545 = vpack.c.b16 %v473, %v472
    %v546 = vpack.c.b16 %v475, %v474
    %v547 = vpack.c.b16 %v477, %v476
    %v548 = vpack.c.b16 %v479, %v478
    %v549 = vpack.c.b16 %v481, %v480
    %v550 = vpack.c.b16 %v483, %v482
    %v551 = vpack.c.b16 %v485, %v484
    %v552 = vpack.c.b16 %v487, %v486
    %v553 = vpack.c.b16 %v489, %v488
    %618 = vmatprep.subr.bf16.mxu0 0
    %619 = vmatpush1.bf16.msra.mxu0 %v490
    %620 = vmatprep.subr.bf16.mxu0 0
    %621 = vmatpush1.bf16.msra.mxu0 %v491
    %622 = vmatprep.subr.bf16.mxu0 0
    %623 = vmatpush1.bf16.msra.mxu0 %v492
    %624 = vmatprep.subr.bf16.mxu0 0
    %625 = vmatpush1.bf16.msra.mxu0 %v493
    %626 = vmatprep.subr.bf16.mxu0 0
    %627 = vmatpush1.bf16.msra.mxu0 %v494
    %628 = vmatprep.subr.bf16.mxu0 0
    %629 = vmatpush1.bf16.msra.mxu0 %v495
    %630 = vmatprep.subr.bf16.mxu0 0
    %631 = vmatpush1.bf16.msra.mxu0 %v496
    %632 = vmatprep.subr.bf16.mxu0 0
    %633 = vmatpush1.bf16.msra.mxu0 %v497
    %634 = vmatprep.subr.bf16.mxu0 0
    %635 = vmatpush1.bf16.msra.mxu0 %v498
    %636 = vmatprep.subr.bf16.mxu0 0
    %637 = vmatpush1.bf16.msra.mxu0 %v499
    %638 = vmatprep.subr.bf16.mxu0 0
    %639 = vmatpush1.bf16.msra.mxu0 %v500
    %640 = vmatprep.subr.bf16.mxu0 0
    %641 = vmatpush1.bf16.msra.mxu0 %v501
    %642 = vmatprep.subr.bf16.mxu0 0
    %643 = vmatpush1.bf16.msra.mxu0 %v502
    %644 = vmatprep.subr.bf16.mxu0 0
    %645 = vmatpush1.bf16.msra.mxu0 %v503
    %646 = vmatprep.subr.bf16.mxu0 0
    %647 = vmatpush1.bf16.msra.mxu0 %v504
    %648 = vmatprep.subr.bf16.mxu0 0
    %649 = vmatpush1.bf16.msra.mxu0 %v505
    %650 = vmatprep.mubr.bf16.mxu0 %v92
    %651 = vmatmul.mubr.bf16.gmra.mrb[0].mxu0 %v91
    %v652 = vpop.f32.mrb[0].mxu0
    %v653 = vadd.f32 %v232, %v652
    %v654 = vpop.f32.mrb[0].mxu0
    %v655 = vpop.f32.mrb[0].mxu0
    %v656 = vpop.f32.mrb[0].mxu0
    %657 = vdwg.mxu0
    %658 = vmatprep.subr.bf16.mxu0 0
    %659 = vmatpush1.bf16.msra.mxu0 %v506
    %660 = vmatprep.subr.bf16.mxu0 0
    %661 = vmatpush1.bf16.msra.mxu0 %v507
    %662 = vmatprep.subr.bf16.mxu0 0
    %663 = vmatpush1.bf16.msra.mxu0 %v508
    %664 = vmatprep.subr.bf16.mxu0 0
    %665 = vmatpush1.bf16.msra.mxu0 %v509
    %666 = vmatprep.subr.bf16.mxu0 0
    %667 = vmatpush1.bf16.msra.mxu0 %v510
    %668 = vmatprep.subr.bf16.mxu0 0
    %669 = vmatpush1.bf16.msra.mxu0 %v511
    %670 = vmatprep.subr.bf16.mxu0 0
    %671 = vmatpush1.bf16.msra.mxu0 %v512
    %672 = vmatprep.subr.bf16.mxu0 0
    %673 = vmatpush1.bf16.msra.mxu0 %v513
    %674 = vmatprep.subr.bf16.mxu0 0
    %675 = vmatpush1.bf16.msra.mxu0 %v514
    %676 = vmatprep.subr.bf16.mxu0 0
    %677 = vmatpush1.bf16.msra.mxu0 %v515
    %678 = vmatprep.subr.bf16.mxu0 0
    %679 = vmatpush1.bf16.msra.mxu0 %v516
    %680 = vmatprep.subr.bf16.mxu0 0
    %681 = vmatpush1.bf16.msra.mxu0 %v517
    %682 = vmatprep.subr.bf16.mxu0 0
    %683 = vmatpush1.bf16.msra.mxu0 %v518
    %684 = vmatprep.subr.bf16.mxu0 0
    %685 = vmatpush1.bf16.msra.mxu0 %v519
    %686 = vmatprep.subr.bf16.mxu0 0
    %687 = vmatpush1.bf16.msra.mxu0 %v520
    %688 = vmatprep.subr.bf16.mxu0 0
    %689 = vmatpush1.bf16.msra.mxu0 %v521
    %690 = vmatprep.mubr.bf16.mxu0 %v94
    %691 = vmatmul.mubr.bf16.gmra.mrb[0].mxu0 %v93
    %v692 = vpop.f32.mrb[0].mxu0
    %v693 = vadd.f32 %v653, %v692
    %v694 = vpop.f32.mrb[0].mxu0
    %v695 = vpop.f32.mrb[0].mxu0
    %v696 = vpop.f32.mrb[0].mxu0
    %697 = vdwg.mxu0
    %698 = vmatprep.subr.bf16.mxu0 0
    %699 = vmatpush1.bf16.msra.mxu0 %v522
    %700 = vmatprep.subr.bf16.mxu0 0
    %701 = vmatpush1.bf16.msra.mxu0 %v523
    %702 = vmatprep.subr.bf16.mxu0 0
    %703 = vmatpush1.bf16.msra.mxu0 %v524
    %704 = vmatprep.subr.bf16.mxu0 0
    %705 = vmatpush1.bf16.msra.mxu0 %v525
    %706 = vmatprep.subr.bf16.mxu0 0
    %707 = vmatpush1.bf16.msra.mxu0 %v526
    %708 = vmatprep.subr.bf16.mxu0 0
    %709 = vmatpush1.bf16.msra.mxu0 %v527
    %710 = vmatprep.subr.bf16.mxu0 0
    %711 = vmatpush1.bf16.msra.mxu0 %v528
    %712 = vmatprep.subr.bf16.mxu0 0
    %713 = vmatpush1.bf16.msra.mxu0 %v529
    %714 = vmatprep.subr.bf16.mxu0 0
    %715 = vmatpush1.bf16.msra.mxu0 %v530
    %716 = vmatprep.subr.bf16.mxu0 0
    %717 = vmatpush1.bf16.msra.mxu0 %v531
    %718 = vmatprep.subr.bf16.mxu0 0
    %719 = vmatpush1.bf16.msra.mxu0 %v532
    %720 = vmatprep.subr.bf16.mxu0 0
    %721 = vmatpush1.bf16.msra.mxu0 %v533
    %722 = vmatprep.subr.bf16.mxu0 0
    %723 = vmatpush1.bf16.msra.mxu0 %v534
    %724 = vmatprep.subr.bf16.mxu0 0
    %725 = vmatpush1.bf16.msra.mxu0 %v535
    %726 = vmatprep.subr.bf16.mxu0 0
    %727 = vmatpush1.bf16.msra.mxu0 %v536
    %728 = vmatprep.subr.bf16.mxu0 0
    %729 = vmatpush1.bf16.msra.mxu0 %v537
    %730 = vmatprep.mubr.bf16.mxu0 %v96
    %731 = vmatmul.mubr.bf16.gmra.mrb[0].mxu0 %v95
    %v732 = vpop.f32.mrb[0].mxu0
    %v733 = vadd.f32 %v693, %v732
    %v734 = vpop.f32.mrb[0].mxu0
    %v735 = vpop.f32.mrb[0].mxu0
    %v736 = vpop.f32.mrb[0].mxu0
    %737 = vdwg.mxu0
    %738 = vmatprep.subr.bf16.mxu0 0
    %739 = vmatpush1.bf16.msra.mxu0 %v538
    %740 = vmatprep.subr.bf16.mxu0 0
    %741 = vmatpush1.bf16.msra.mxu0 %v539
    %742 = vmatprep.subr.bf16.mxu0 0
    %743 = vmatpush1.bf16.msra.mxu0 %v540
    %744 = vmatprep.subr.bf16.mxu0 0
    %745 = vmatpush1.bf16.msra.mxu0 %v541
    %746 = vmatprep.subr.bf16.mxu0 0
    %747 = vmatpush1.bf16.msra.mxu0 %v542
    %748 = vmatprep.subr.bf16.mxu0 0
    %749 = vmatpush1.bf16.msra.mxu0 %v543
    %750 = vmatprep.subr.bf16.mxu0 0
    %751 = vmatpush1.bf16.msra.mxu0 %v544
    %752 = vmatprep.subr.bf16.mxu0 0
    %753 = vmatpush1.bf16.msra.mxu0 %v545
    %754 = vmatprep.subr.bf16.mxu0 0
    %755 = vmatpush1.bf16.msra.mxu0 %v546
    %756 = vmatprep.subr.bf16.mxu0 0
    %757 = vmatpush1.bf16.msra.mxu0 %v547
    %758 = vmatprep.subr.bf16.mxu0 0
    %759 = vmatpush1.bf16.msra.mxu0 %v548
    %760 = vmatprep.subr.bf16.mxu0 0
    %761 = vmatpush1.bf16.msra.mxu0 %v549
    %762 = vmatprep.subr.bf16.mxu0 0
    %763 = vmatpush1.bf16.msra.mxu0 %v550
    %764 = vmatprep.subr.bf16.mxu0 0
    %765 = vmatpush1.bf16.msra.mxu0 %v551
    %766 = vmatprep.subr.bf16.mxu0 0
    %767 = vmatpush1.bf16.msra.mxu0 %v552
    %768 = vmatprep.subr.bf16.mxu0 0
    %769 = vmatpush1.bf16.msra.mxu0 %v553
    %770 = vmatprep.mubr.bf16.mxu0 %v98
    %771 = vmatmul.mubr.bf16.gmra.mrb[0].mxu0 %v97
    %v772 = vpop.f32.mrb[0].mxu0
    %v773 = vadd.f32 %v733, %v772
    %v774 = vpop.f32.mrb[0].mxu0
    %v775 = vpop.f32.mrb[0].mxu0
    %v776 = vpop.f32.mrb[0].mxu0
    %777 = vdwg.mxu0
    %vm778 = vcmask 523264
    %v779 = vsel %vm778, %v773, 0.0
    %780 = vadd.xlane.f32.xlu0 %v779
    %v781 = vpop.xlane.xlu0 %780
    %v782 = vrcp.pop 64.0
    %v783 = vmul.f32 %v781, %v782
    %v784 = vsub.f32 %v773, %v783
    %v785 = vmul.f32 %v784, %v784
    %v786 = vsel %vm778, %v785, 0.0
    %787 = vadd.xlane.f32.xlu0 %v786
    %v788 = vpop.xlane.xlu0 %787
    %v789 = vmul.f32 %v788, %v782
    %v790 = vadd.f32 %v789, 1e-05
    %v791 = vrsqrt.pop %v790
    %v792 = vmul.f32 %v784, %v791
    %v793 = vld [vmem:[%s4] sm:$0x1]
    %v795 = vlaneseq
    %v796 = vshrl.u32 %v795, 7
    %v797 = vsub.s32 0, %v796
    %v798 = vrot.slane %v793, %v797
    %v800 = vmul.f32 %v792, %v798
    %v801 = vld [vmem:[%s5] sm:$0x1]
    %v803 = vlaneseq
    %v804 = vshrl.u32 %v803, 7
    %v805 = vsub.s32 0, %v804
    %v806 = vrot.slane %v801, %v805
    %v808 = vadd.f32 %v800, %v806
    %v809 = vmax.f32 %v808, 0.0
    %v810 = vpack.c.bf16 %v809, %v809
    %v811 = vld [vmem:[%s6] sm:$0xf]
    %v812 = vld [vmem:[%s6 + $0x4] sm:$0xf]
    %v813 = vld [vmem:[%s6 + $0x8] sm:$0xf]
    %v814 = vld [vmem:[%s6 + $0xc] sm:$0xf]
    %v815 = vld [vmem:[%s6 + $0x10] sm:$0xf]
    %v816 = vld [vmem:[%s6 + $0x14] sm:$0xf]
    %v817 = vld [vmem:[%s6 + $0x18] sm:$0xf]
    %v818 = vld [vmem:[%s6 + $0x1c] sm:$0xf]
    %v819 = vld [vmem:[%s7] sm:$0x1]
    %v821 = vlaneseq
    %v822 = vshrl.u32 %v821, 7
    %v823 = vsub.s32 0, %v822
    %v824 = vrot.slane %v819, %v823
    %v834 = vunpack.c.l.b16 %v811
    %v835 = vunpack.c.l.b16 %v812
    %v836 = vunpack.c.l.b16 %v813
    %v837 = vunpack.c.l.b16 %v814
    %v838 = vunpack.c.l.b16 %v815
    %v839 = vunpack.c.l.b16 %v816
    %v840 = vunpack.c.l.b16 %v817
    %v841 = vunpack.c.l.b16 %v818
    %v842 = vpack.c.b16 %v835, %v834
    %v843 = vpack.c.b16 %v837, %v836
    %v844 = vpack.c.b16 %v839, %v838
    %v845 = vpack.c.b16 %v841, %v840
    %v851 = vsel %vm778, %v810, 0
    %853 = vmatprep.subr.bf16.mxu0 0
    %854 = vmatpush1.bf16.msra.mxu0 %v842
    %855 = vmatprep.subr.bf16.mxu0 0
    %856 = vmatpush1.bf16.msra.mxu0 %v843
    %857 = vmatprep.subr.bf16.mxu0 0
    %858 = vmatpush1.bf16.msra.mxu0 %v844
    %859 = vmatprep.subr.bf16.mxu0 0
    %860 = vmatpush1.bf16.msra.mxu0 %v845
    %861 = vmatprep.subr.bf16.mxu0 0
    %862 = vmatpush1.bf16.msra.mxu0 0
    %863 = vmatprep.subr.bf16.mxu0 0
    %864 = vmatpush1.bf16.msra.mxu0 0
    %865 = vmatprep.subr.bf16.mxu0 0
    %866 = vmatpush1.bf16.msra.mxu0 0
    %867 = vmatprep.subr.bf16.mxu0 0
    %868 = vmatpush1.bf16.msra.mxu0 0
    %869 = vmatprep.subr.bf16.mxu0 0
    %870 = vmatpush1.bf16.msra.mxu0 0
    %871 = vmatprep.subr.bf16.mxu0 0
    %872 = vmatpush1.bf16.msra.mxu0 0
    %873 = vmatprep.subr.bf16.mxu0 0
    %874 = vmatpush1.bf16.msra.mxu0 0
    %875 = vmatprep.subr.bf16.mxu0 0
    %876 = vmatpush1.bf16.msra.mxu0 0
    %877 = vmatprep.subr.bf16.mxu0 0
    %878 = vmatpush1.bf16.msra.mxu0 0
    %879 = vmatprep.subr.bf16.mxu0 0
    %880 = vmatpush1.bf16.msra.mxu0 0
    %881 = vmatprep.subr.bf16.mxu0 0
    %882 = vmatpush1.bf16.msra.mxu0 0
    %883 = vmatprep.subr.bf16.mxu0 0
    %884 = vmatpush1.bf16.msra.mxu0 0
    %885 = vmatprep.mubr.bf16.mxu0 0
    %886 = vmatmul.mubr.bf16.gmra.mrb[0].mxu0 %v851
    %v887 = vpop.f32.mrb[0].mxu0
    %v888 = vadd.f32 %v824, %v887
    %v889 = vpop.f32.mrb[0].mxu0
    %v890 = vpop.f32.mrb[0].mxu0
    %v891 = vpop.f32.mrb[0].mxu0
    %892 = vdwg.mxu0
    %vm893 = vcmask 261120
    %v894 = vsel %vm893, %v888, 0.0
    %895 = vadd.xlane.f32.xlu0 %v894
    %v896 = vpop.xlane.xlu0 %895
    %v897 = vrcp.pop 32.0
    %v898 = vmul.f32 %v896, %v897
    %v899 = vsub.f32 %v888, %v898
    %v900 = vmul.f32 %v899, %v899
    %v901 = vsel %vm893, %v900, 0.0
    %902 = vadd.xlane.f32.xlu0 %v901
    %v903 = vpop.xlane.xlu0 %902
    %v904 = vmul.f32 %v903, %v897
    %v905 = vadd.f32 %v904, 1e-05
    %v906 = vrsqrt.pop %v905
    %v907 = vmul.f32 %v899, %v906
    %v908 = vld [vmem:[%s8] sm:$0x1]
    %v910 = vlaneseq
    %v911 = vshrl.u32 %v910, 7
    %v912 = vsub.s32 0, %v911
    %v913 = vrot.slane %v908, %v912
    %v915 = vmul.f32 %v907, %v913
    %v916 = vld [vmem:[%s9] sm:$0x1]
    %v918 = vlaneseq
    %v919 = vshrl.u32 %v918, 7
    %v920 = vsub.s32 0, %v919
    %v921 = vrot.slane %v916, %v920
    %v923 = vadd.f32 %v915, %v921
    %v924 = vmax.f32 %v923, 0.0
    %v925 = vpack.c.bf16 %v924, %v924
    %v926 = vld [vmem:[%s10] sm:$0xf]
    %v927 = vld [vmem:[%s10 + $0x4] sm:$0xf]
    %v928 = vld [vmem:[%s10 + $0x8] sm:$0xf]
    %v929 = vld [vmem:[%s10 + $0xc] sm:$0xf]
    %v930 = vld [vmem:[%s11] sm:$0x1]
    %v932 = vlaneseq
    %v933 = vshrl.u32 %v932, 7
    %v934 = vsub.s32 0, %v933
    %v935 = vrot.slane %v930, %v934
    %v941 = vunpack.c.l.b16 %v926
    %v942 = vunpack.c.l.b16 %v927
    %v943 = vunpack.c.l.b16 %v928
    %v944 = vunpack.c.l.b16 %v929
    %v945 = vpack.c.b16 %v942, %v941
    %v946 = vpack.c.b16 %v944, %v943
    %v950 = vsel %vm893, %v925, 0
    %952 = vmatprep.subr.bf16.mxu0 0
    %953 = vmatpush1.bf16.msra.mxu0 %v945
    %954 = vmatprep.subr.bf16.mxu0 0
    %955 = vmatpush1.bf16.msra.mxu0 %v946
    %956 = vmatprep.subr.bf16.mxu0 0
    %957 = vmatpush1.bf16.msra.mxu0 0
    %958 = vmatprep.subr.bf16.mxu0 0
    %959 = vmatpush1.bf16.msra.mxu0 0
    %960 = vmatprep.subr.bf16.mxu0 0
    %961 = vmatpush1.bf16.msra.mxu0 0
    %962 = vmatprep.subr.bf16.mxu0 0
    %963 = vmatpush1.bf16.msra.mxu0 0
    %964 = vmatprep.subr.bf16.mxu0 0
    %965 = vmatpush1.bf16.msra.mxu0 0
    %966 = vmatprep.subr.bf16.mxu0 0
    %967 = vmatpush1.bf16.msra.mxu0 0
    %968 = vmatprep.subr.bf16.mxu0 0
    %969 = vmatpush1.bf16.msra.mxu0 0
    %970 = vmatprep.subr.bf16.mxu0 0
    %971 = vmatpush1.bf16.msra.mxu0 0
    %972 = vmatprep.subr.bf16.mxu0 0
    %973 = vmatpush1.bf16.msra.mxu0 0
    %974 = vmatprep.subr.bf16.mxu0 0
    %975 = vmatpush1.bf16.msra.mxu0 0
    %976 = vmatprep.subr.bf16.mxu0 0
    %977 = vmatpush1.bf16.msra.mxu0 0
    %978 = vmatprep.subr.bf16.mxu0 0
    %979 = vmatpush1.bf16.msra.mxu0 0
    %980 = vmatprep.subr.bf16.mxu0 0
    %981 = vmatpush1.bf16.msra.mxu0 0
    %982 = vmatprep.subr.bf16.mxu0 0
    %983 = vmatpush1.bf16.msra.mxu0 0
    %984 = vmatprep.mubr.bf16.mxu0 0
    %985 = vmatmul.mubr.bf16.gmra.mrb[0].mxu0 %v950
    %v986 = vpop.f32.mrb[0].mxu0
    %v987 = vadd.f32 %v935, %v986
    %v988 = vpop.f32.mrb[0].mxu0
    %v989 = vpop.f32.mrb[0].mxu0
    %v990 = vpop.f32.mrb[0].mxu0
    %991 = vdwg.mxu0
    %v992 = vld [vmem:[%s12] sm:$0xf]
    %v993 = vld [vmem:[%s12 + $0x4] sm:$0xf]
    %v994 = vld [vmem:[%s12 + $0x8] sm:$0xf]
    %v995 = vld [vmem:[%s12 + $0xc] sm:$0xf]
    %v996 = vld [vmem:[%s13] sm:$0x1]
    %v998 = vlaneseq
    %v999 = vshrl.u32 %v998, 7
    %v1000 = vsub.s32 0, %v999
    %v1001 = vrot.slane %v996, %v1000
    %v1007 = vunpack.c.l.b16 %v992
    %v1008 = vunpack.c.l.b16 %v993
    %v1009 = vunpack.c.l.b16 %v994
    %v1010 = vunpack.c.l.b16 %v995
    %v1011 = vpack.c.b16 %v1008, %v1007
    %v1012 = vpack.c.b16 %v1010, %v1009
    %1015 = vmatprep.subr.bf16.mxu0 0
    %1016 = vmatpush1.bf16.msra.mxu0 %v1011
    %1017 = vmatprep.subr.bf16.mxu0 0
    %1018 = vmatpush1.bf16.msra.mxu0 %v1012
    %1019 = vmatprep.subr.bf16.mxu0 0
    %1020 = vmatpush1.bf16.msra.mxu0 0
    %1021 = vmatprep.subr.bf16.mxu0 0
    %1022 = vmatpush1.bf16.msra.mxu0 0
    %1023 = vmatprep.subr.bf16.mxu0 0
    %1024 = vmatpush1.bf16.msra.mxu0 0
    %1025 = vmatprep.subr.bf16.mxu0 0
    %1026 = vmatpush1.bf16.msra.mxu0 0
    %1027 = vmatprep.subr.bf16.mxu0 0
    %1028 = vmatpush1.bf16.msra.mxu0 0
    %1029 = vmatprep.subr.bf16.mxu0 0
    %1030 = vmatpush1.bf16.msra.mxu0 0
    %1031 = vmatprep.subr.bf16.mxu0 0
    %1032 = vmatpush1.bf16.msra.mxu0 0
    %1033 = vmatprep.subr.bf16.mxu0 0
    %1034 = vmatpush1.bf16.msra.mxu0 0
    %1035 = vmatprep.subr.bf16.mxu0 0
    %1036 = vmatpush1.bf16.msra.mxu0 0
    %1037 = vmatprep.subr.bf16.mxu0 0
    %1038 = vmatpush1.bf16.msra.mxu0 0
    %1039 = vmatprep.subr.bf16.mxu0 0
    %1040 = vmatpush1.bf16.msra.mxu0 0
    %1041 = vmatprep.subr.bf16.mxu0 0
    %1042 = vmatpush1.bf16.msra.mxu0 0
    %1043 = vmatprep.subr.bf16.mxu0 0
    %1044 = vmatpush1.bf16.msra.mxu0 0
    %1045 = vmatprep.subr.bf16.mxu0 0
    %1046 = vmatpush1.bf16.msra.mxu0 0
    %1047 = vmatprep.mubr.bf16.mxu0 0
    %1048 = vmatmul.mubr.bf16.gmra.mrb[0].mxu0 %v950
    %v1049 = vpop.f32.mrb[0].mxu0
    %v1050 = vadd.f32 %v1001, %v1049
    %v1051 = vpop.f32.mrb[0].mxu0
    %v1052 = vpop.f32.mrb[0].mxu0
    %v1053 = vpop.f32.mrb[0].mxu0
    %1054 = vdwg.mxu0
    %v1055 = vmul.f32 %v1050, 1.442695
    %v1056 = vpow.pop %v1055
    %v1057 = vadd.f32 %v1056, 0.0001
    %v1058 = vrsqrt.pop %v1057
    %v1059 = vmul.f32 %v1057, %v1058
    %vm1060 = vcmp.eq.f32.partialorder %v1057, inf
    %v1061 = vsel %vm1060, %v1057, %v1059
    %vm1062 = vcmp.eq.f32.partialorder %v1057, 0.0
    %v1063 = vand.u32 %v1057, 2147483648
    %v1064 = vsel %vm1062, %v1063, %v1061
    %v1065 = vld [vmem:[%s1] sm:$0xff]
    %v1066 = vmul.f32 %v1064, %v1065
    %v1067 = vadd.f32 %v987, %v1066
    %v1068 = vpack.c.bf16 %v1067, %v1067
    %v1069 = vld [vmem:[%s14] sm:$0xf]
    %v1070 = vld [vmem:[%s14 + $0x4] sm:$0xf]
    %v1071 = vld [vmem:[%s15] sm:$0x1]
    %v1073 = vlaneseq
    %v1074 = vshrl.u32 %v1073, 7
    %v1075 = vsub.s32 0, %v1074
    %v1076 = vrot.slane %v1071, %v1075
    %v1080 = vunpack.c.l.b16 %v1069
    %v1081 = vunpack.c.l.b16 %v1070
    %v1082 = vpack.c.b16 %v1081, %v1080
    %vm1084 = vcmask 130048
    %v1086 = vsel %vm1084, %v1068, 0
    %1088 = vmatprep.subr.bf16.mxu0 0
    %1089 = vmatpush1.bf16.msra.mxu0 %v1082
    %1090 = vmatprep.subr.bf16.mxu0 0
    %1091 = vmatpush1.bf16.msra.mxu0 0
    %1092 = vmatprep.subr.bf16.mxu0 0
    %1093 = vmatpush1.bf16.msra.mxu0 0
    %1094 = vmatprep.subr.bf16.mxu0 0
    %1095 = vmatpush1.bf16.msra.mxu0 0
    %1096 = vmatprep.subr.bf16.mxu0 0
    %1097 = vmatpush1.bf16.msra.mxu0 0
    %1098 = vmatprep.subr.bf16.mxu0 0
    %1099 = vmatpush1.bf16.msra.mxu0 0
    %1100 = vmatprep.subr.bf16.mxu0 0
    %1101 = vmatpush1.bf16.msra.mxu0 0
    %1102 = vmatprep.subr.bf16.mxu0 0
    %1103 = vmatpush1.bf16.msra.mxu0 0
    %1104 = vmatprep.subr.bf16.mxu0 0
    %1105 = vmatpush1.bf16.msra.mxu0 0
    %1106 = vmatprep.subr.bf16.mxu0 0
    %1107 = vmatpush1.bf16.msra.mxu0 0
    %1108 = vmatprep.subr.bf16.mxu0 0
    %1109 = vmatpush1.bf16.msra.mxu0 0
    %1110 = vmatprep.subr.bf16.mxu0 0
    %1111 = vmatpush1.bf16.msra.mxu0 0
    %1112 = vmatprep.subr.bf16.mxu0 0
    %1113 = vmatpush1.bf16.msra.mxu0 0
    %1114 = vmatprep.subr.bf16.mxu0 0
    %1115 = vmatpush1.bf16.msra.mxu0 0
    %1116 = vmatprep.subr.bf16.mxu0 0
    %1117 = vmatpush1.bf16.msra.mxu0 0
    %1118 = vmatprep.subr.bf16.mxu0 0
    %1119 = vmatpush1.bf16.msra.mxu0 0
    %1120 = vmatprep.mubr.bf16.mxu0 0
    %1121 = vmatmul.mubr.bf16.gmra.mrb[0].mxu0 %v1086
    %v1122 = vpop.f32.mrb[0].mxu0
    %v1123 = vadd.f32 %v1076, %v1122
    %v1124 = vpop.f32.mrb[0].mxu0
    %v1125 = vpop.f32.mrb[0].mxu0
    %v1126 = vpop.f32.mrb[0].mxu0
    %1127 = vdwg.mxu0
    %v1128 = vsel %vm893, %v1123, 0.0
    %1129 = vadd.xlane.f32.xlu0 %v1128
    %v1130 = vpop.xlane.xlu0 %1129
    %v1131 = vmul.f32 %v1130, %v897
    %v1132 = vsub.f32 %v1123, %v1131
    %v1133 = vmul.f32 %v1132, %v1132
    %v1134 = vsel %vm893, %v1133, 0.0
    %1135 = vadd.xlane.f32.xlu0 %v1134
    %v1136 = vpop.xlane.xlu0 %1135
    %v1137 = vmul.f32 %v1136, %v897
    %v1138 = vadd.f32 %v1137, 1e-05
    %v1139 = vrsqrt.pop %v1138
    %v1140 = vmul.f32 %v1132, %v1139
    %v1141 = vld [vmem:[%s16] sm:$0x1]
    %v1143 = vlaneseq
    %v1144 = vshrl.u32 %v1143, 7
    %v1145 = vsub.s32 0, %v1144
    %v1146 = vrot.slane %v1141, %v1145
    %v1148 = vmul.f32 %v1140, %v1146
    %v1149 = vld [vmem:[%s17] sm:$0x1]
    %v1151 = vlaneseq
    %v1152 = vshrl.u32 %v1151, 7
    %v1153 = vsub.s32 0, %v1152
    %v1154 = vrot.slane %v1149, %v1153
    %v1156 = vadd.f32 %v1148, %v1154
    %v1157 = vmax.f32 %v1156, 0.0
    %v1158 = vpack.c.bf16 %v1157, %v1157
    %v1159 = vld [vmem:[%s18] sm:$0xf]
    %v1160 = vld [vmem:[%s18 + $0x4] sm:$0xf]
    %v1161 = vld [vmem:[%s18 + $0x8] sm:$0xf]
    %v1162 = vld [vmem:[%s18 + $0xc] sm:$0xf]
    %v1163 = vld [vmem:[%s19] sm:$0x1]
    %v1165 = vlaneseq
    %v1166 = vshrl.u32 %v1165, 7
    %v1167 = vsub.s32 0, %v1166
    %v1168 = vrot.slane %v1163, %v1167
    %v1174 = vunpack.c.l.b16 %v1159
    %v1175 = vunpack.c.l.b16 %v1160
    %v1176 = vunpack.c.l.b16 %v1161
    %v1177 = vunpack.c.l.b16 %v1162
    %v1178 = vpack.c.b16 %v1175, %v1174
    %v1179 = vpack.c.b16 %v1177, %v1176
    %v1183 = vsel %vm893, %v1158, 0
    %1185 = vmatprep.subr.bf16.mxu0 0
    %1186 = vmatpush1.bf16.msra.mxu0 %v1178
    %1187 = vmatprep.subr.bf16.mxu0 0
    %1188 = vmatpush1.bf16.msra.mxu0 %v1179
    %1189 = vmatprep.subr.bf16.mxu0 0
    %1190 = vmatpush1.bf16.msra.mxu0 0
    %1191 = vmatprep.subr.bf16.mxu0 0
    %1192 = vmatpush1.bf16.msra.mxu0 0
    %1193 = vmatprep.subr.bf16.mxu0 0
    %1194 = vmatpush1.bf16.msra.mxu0 0
    %1195 = vmatprep.subr.bf16.mxu0 0
    %1196 = vmatpush1.bf16.msra.mxu0 0
    %1197 = vmatprep.subr.bf16.mxu0 0
    %1198 = vmatpush1.bf16.msra.mxu0 0
    %1199 = vmatprep.subr.bf16.mxu0 0
    %1200 = vmatpush1.bf16.msra.mxu0 0
    %1201 = vmatprep.subr.bf16.mxu0 0
    %1202 = vmatpush1.bf16.msra.mxu0 0
    %1203 = vmatprep.subr.bf16.mxu0 0
    %1204 = vmatpush1.bf16.msra.mxu0 0
    %1205 = vmatprep.subr.bf16.mxu0 0
    %1206 = vmatpush1.bf16.msra.mxu0 0
    %1207 = vmatprep.subr.bf16.mxu0 0
    %1208 = vmatpush1.bf16.msra.mxu0 0
    %1209 = vmatprep.subr.bf16.mxu0 0
    %1210 = vmatpush1.bf16.msra.mxu0 0
    %1211 = vmatprep.subr.bf16.mxu0 0
    %1212 = vmatpush1.bf16.msra.mxu0 0
    %1213 = vmatprep.subr.bf16.mxu0 0
    %1214 = vmatpush1.bf16.msra.mxu0 0
    %1215 = vmatprep.subr.bf16.mxu0 0
    %1216 = vmatpush1.bf16.msra.mxu0 0
    %1217 = vmatprep.mubr.bf16.mxu0 0
    %1218 = vmatmul.mubr.bf16.gmra.mrb[0].mxu0 %v1183
    %v1219 = vpop.f32.mrb[0].mxu0
    %v1220 = vadd.f32 %v1168, %v1219
    %v1221 = vpop.f32.mrb[0].mxu0
    %v1222 = vpop.f32.mrb[0].mxu0
    %v1223 = vpop.f32.mrb[0].mxu0
    %1224 = vdwg.mxu0
    %v1225 = vsel %vm778, %v1220, 0.0
    %1226 = vadd.xlane.f32.xlu0 %v1225
    %v1227 = vpop.xlane.xlu0 %1226
    %v1228 = vmul.f32 %v1227, %v782
    %v1229 = vsub.f32 %v1220, %v1228
    %v1230 = vmul.f32 %v1229, %v1229
    %v1231 = vsel %vm778, %v1230, 0.0
    %1232 = vadd.xlane.f32.xlu0 %v1231
    %v1233 = vpop.xlane.xlu0 %1232
    %v1234 = vmul.f32 %v1233, %v782
    %v1235 = vadd.f32 %v1234, 1e-05
    %v1236 = vrsqrt.pop %v1235
    %v1237 = vmul.f32 %v1229, %v1236
    %v1238 = vld [vmem:[%s20] sm:$0x1]
    %v1240 = vlaneseq
    %v1241 = vshrl.u32 %v1240, 7
    %v1242 = vsub.s32 0, %v1241
    %v1243 = vrot.slane %v1238, %v1242
    %v1245 = vmul.f32 %v1237, %v1243
    %v1246 = vld [vmem:[%s21] sm:$0x1]
    %v1248 = vlaneseq
    %v1249 = vshrl.u32 %v1248, 7
    %v1250 = vsub.s32 0, %v1249
    %v1251 = vrot.slane %v1246, %v1250
    %v1253 = vadd.f32 %v1245, %v1251
    %v1254 = vmax.f32 %v1253, 0.0
    %v1255 = vpack.c.bf16 %v1254, %v1254
    %v1256 = vld [vmem:[%s22] sm:$0xff]
    %v1257 = vld [vmem:[%s22 + $0x8] sm:$0xff]
    %v1258 = vld [vmem:[%s22 + $0x10] sm:$0xff]
    %v1259 = vld [vmem:[%s22 + $0x18] sm:$0xff]
    %v1260 = vld [vmem:[%s22 + $0x20] sm:$0xff]
    %v1261 = vld [vmem:[%s22 + $0x28] sm:$0xff]
    %v1262 = vld [vmem:[%s22 + $0x30] sm:$0xff]
    %v1263 = vld [vmem:[%s22 + $0x38] sm:$0xff]
    %v1264 = vld [vmem:[%s22 + $0x40] sm:$0xff]
    %v1265 = vld [vmem:[%s22 + $0x48] sm:$0xff]
    %v1266 = vld [vmem:[%s22 + $0x50] sm:$0xff]
    %v1267 = vld [vmem:[%s22 + $0x58] sm:$0xff]
    %v1268 = vld [vmem:[%s22 + $0x60] sm:$0xff]
    %v1269 = vld [vmem:[%s22 + $0x68] sm:$0xff]
    %v1270 = vld [vmem:[%s22 + $0x70] sm:$0xff]
    %v1271 = vld [vmem:[%s22 + $0x78] sm:$0xff]
    %v1272 = vld [vmem:[%s22 + $0x80] sm:$0xff]
    %v1273 = vld [vmem:[%s22 + $0x88] sm:$0xff]
    %v1274 = vld [vmem:[%s22 + $0x90] sm:$0xff]
    %v1275 = vld [vmem:[%s22 + $0x98] sm:$0xff]
    %v1276 = vld [vmem:[%s22 + $0xa0] sm:$0xff]
    %v1277 = vld [vmem:[%s22 + $0xa8] sm:$0xff]
    %v1278 = vld [vmem:[%s22 + $0xb0] sm:$0xff]
    %v1279 = vld [vmem:[%s22 + $0xb8] sm:$0xff]
    %v1280 = vld [vmem:[%s22 + $0xc0] sm:$0xff]
    %v1281 = vld [vmem:[%s22 + $0xc8] sm:$0xff]
    %v1282 = vld [vmem:[%s22 + $0xd0] sm:$0xff]
    %v1283 = vld [vmem:[%s22 + $0xd8] sm:$0xff]
    %v1284 = vld [vmem:[%s22 + $0xe0] sm:$0xff]
    %v1285 = vld [vmem:[%s22 + $0xe8] sm:$0xff]
    %v1286 = vld [vmem:[%s22 + $0xf0] sm:$0xff]
    %v1287 = vld [vmem:[%s22 + $0xf8] sm:$0xff]
    %v1288 = vld [vmem:[%s23] sm:$0xff]
    %v1290 = vlaneseq
    %v1291 = vshrl.u32 %v1290, 7
    %v1292 = vsub.s32 0, %v1291
    %v1293 = vrot.slane %v1288, %v1292
    %v1294 = vlaneseq
    %v1295 = vshrl.u32 %v1294, 7
    %v1296 = vsub.s32 1, %v1295
    %v1297 = vrot.slane %v1288, %v1296
    %v1298 = vlaneseq
    %v1299 = vshrl.u32 %v1298, 7
    %v1300 = vsub.s32 2, %v1299
    %v1301 = vrot.slane %v1288, %v1300
    %v1302 = vlaneseq
    %v1303 = vshrl.u32 %v1302, 7
    %v1304 = vsub.s32 3, %v1303
    %v1305 = vrot.slane %v1288, %v1304
    %v1306 = vlaneseq
    %v1307 = vshrl.u32 %v1306, 7
    %v1308 = vsub.s32 4, %v1307
    %v1309 = vrot.slane %v1288, %v1308
    %v1310 = vlaneseq
    %v1311 = vshrl.u32 %v1310, 7
    %v1312 = vsub.s32 5, %v1311
    %v1313 = vrot.slane %v1288, %v1312
    %v1314 = vlaneseq
    %v1315 = vshrl.u32 %v1314, 7
    %v1316 = vsub.s32 6, %v1315
    %v1317 = vrot.slane %v1288, %v1316
    %v1318 = vlaneseq
    %v1319 = vshrl.u32 %v1318, 7
    %v1320 = vsub.s32 7, %v1319
    %v1321 = vrot.slane %v1288, %v1320
    %v1362 = vunpack.c.l.b16 %v1256
    %v1363 = vunpack.c.h.b16 %v1256
    %v1364 = vunpack.c.l.b16 %v1257
    %v1365 = vunpack.c.h.b16 %v1257
    %v1366 = vunpack.c.l.b16 %v1258
    %v1367 = vunpack.c.h.b16 %v1258
    %v1368 = vunpack.c.l.b16 %v1259
    %v1369 = vunpack.c.h.b16 %v1259
    %v1370 = vunpack.c.l.b16 %v1260
    %v1371 = vunpack.c.h.b16 %v1260
    %v1372 = vunpack.c.l.b16 %v1261
    %v1373 = vunpack.c.h.b16 %v1261
    %v1374 = vunpack.c.l.b16 %v1262
    %v1375 = vunpack.c.h.b16 %v1262
    %v1376 = vunpack.c.l.b16 %v1263
    %v1377 = vunpack.c.h.b16 %v1263
    %v1378 = vunpack.c.l.b16 %v1264
    %v1379 = vunpack.c.h.b16 %v1264
    %v1380 = vunpack.c.l.b16 %v1265
    %v1381 = vunpack.c.h.b16 %v1265
    %v1382 = vunpack.c.l.b16 %v1266
    %v1383 = vunpack.c.h.b16 %v1266
    %v1384 = vunpack.c.l.b16 %v1267
    %v1385 = vunpack.c.h.b16 %v1267
    %v1386 = vunpack.c.l.b16 %v1268
    %v1387 = vunpack.c.h.b16 %v1268
    %v1388 = vunpack.c.l.b16 %v1269
    %v1389 = vunpack.c.h.b16 %v1269
    %v1390 = vunpack.c.l.b16 %v1270
    %v1391 = vunpack.c.h.b16 %v1270
    %v1392 = vunpack.c.l.b16 %v1271
    %v1393 = vunpack.c.h.b16 %v1271
    %v1394 = vunpack.c.l.b16 %v1272
    %v1395 = vunpack.c.h.b16 %v1272
    %v1396 = vunpack.c.l.b16 %v1273
    %v1397 = vunpack.c.h.b16 %v1273
    %v1398 = vunpack.c.l.b16 %v1274
    %v1399 = vunpack.c.h.b16 %v1274
    %v1400 = vunpack.c.l.b16 %v1275
    %v1401 = vunpack.c.h.b16 %v1275
    %v1402 = vunpack.c.l.b16 %v1276
    %v1403 = vunpack.c.h.b16 %v1276
    %v1404 = vunpack.c.l.b16 %v1277
    %v1405 = vunpack.c.h.b16 %v1277
    %v1406 = vunpack.c.l.b16 %v1278
    %v1407 = vunpack.c.h.b16 %v1278
    %v1408 = vunpack.c.l.b16 %v1279
    %v1409 = vunpack.c.h.b16 %v1279
    %v1410 = vunpack.c.l.b16 %v1280
    %v1411 = vunpack.c.h.b16 %v1280
    %v1412 = vunpack.c.l.b16 %v1281
    %v1413 = vunpack.c.h.b16 %v1281
    %v1414 = vunpack.c.l.b16 %v1282
    %v1415 = vunpack.c.h.b16 %v1282
    %v1416 = vunpack.c.l.b16 %v1283
    %v1417 = vunpack.c.h.b16 %v1283
    %v1418 = vunpack.c.l.b16 %v1284
    %v1419 = vunpack.c.h.b16 %v1284
    %v1420 = vunpack.c.l.b16 %v1285
    %v1421 = vunpack.c.h.b16 %v1285
    %v1422 = vunpack.c.l.b16 %v1286
    %v1423 = vunpack.c.h.b16 %v1286
    %v1424 = vunpack.c.l.b16 %v1287
    %v1425 = vunpack.c.h.b16 %v1287
    %v1426 = vpack.c.b16 %v1370, %v1362
    %v1427 = vpack.c.b16 %v1371, %v1363
    %v1428 = vpack.c.b16 %v1372, %v1364
    %v1429 = vpack.c.b16 %v1373, %v1365
    %v1430 = vpack.c.b16 %v1374, %v1366
    %v1431 = vpack.c.b16 %v1375, %v1367
    %v1432 = vpack.c.b16 %v1376, %v1368
    %v1433 = vpack.c.b16 %v1377, %v1369
    %v1434 = vpack.c.b16 %v1386, %v1378
    %v1435 = vpack.c.b16 %v1387, %v1379
    %v1436 = vpack.c.b16 %v1388, %v1380
    %v1437 = vpack.c.b16 %v1389, %v1381
    %v1438 = vpack.c.b16 %v1390, %v1382
    %v1439 = vpack.c.b16 %v1391, %v1383
    %v1440 = vpack.c.b16 %v1392, %v1384
    %v1441 = vpack.c.b16 %v1393, %v1385
    %v1442 = vpack.c.b16 %v1402, %v1394
    %v1443 = vpack.c.b16 %v1403, %v1395
    %v1444 = vpack.c.b16 %v1404, %v1396
    %v1445 = vpack.c.b16 %v1405, %v1397
    %v1446 = vpack.c.b16 %v1406, %v1398
    %v1447 = vpack.c.b16 %v1407, %v1399
    %v1448 = vpack.c.b16 %v1408, %v1400
    %v1449 = vpack.c.b16 %v1409, %v1401
    %v1450 = vpack.c.b16 %v1418, %v1410
    %v1451 = vpack.c.b16 %v1419, %v1411
    %v1452 = vpack.c.b16 %v1420, %v1412
    %v1453 = vpack.c.b16 %v1421, %v1413
    %v1454 = vpack.c.b16 %v1422, %v1414
    %v1455 = vpack.c.b16 %v1423, %v1415
    %v1456 = vpack.c.b16 %v1424, %v1416
    %v1457 = vpack.c.b16 %v1425, %v1417
    %v1491 = vsel %vm778, %v1255, 0
    %1493 = vmatprep.subr.bf16.mxu0 %v1427
    %1494 = vmatpush1.bf16.msra.mxu0 %v1426
    %1495 = vmatprep.subr.bf16.mxu0 %v1435
    %1496 = vmatpush1.bf16.msra.mxu0 %v1434
    %1497 = vmatprep.subr.bf16.mxu0 %v1443
    %1498 = vmatpush1.bf16.msra.mxu0 %v1442
    %1499 = vmatprep.subr.bf16.mxu0 %v1451
    %1500 = vmatpush1.bf16.msra.mxu0 %v1450
    %1501 = vmatprep.subr.bf16.mxu0 0
    %1502 = vmatpush1.bf16.msra.mxu0 0
    %1503 = vmatprep.subr.bf16.mxu0 0
    %1504 = vmatpush1.bf16.msra.mxu0 0
    %1505 = vmatprep.subr.bf16.mxu0 0
    %1506 = vmatpush1.bf16.msra.mxu0 0
    %1507 = vmatprep.subr.bf16.mxu0 0
    %1508 = vmatpush1.bf16.msra.mxu0 0
    %1509 = vmatprep.subr.bf16.mxu0 0
    %1510 = vmatpush1.bf16.msra.mxu0 0
    %1511 = vmatprep.subr.bf16.mxu0 0
    %1512 = vmatpush1.bf16.msra.mxu0 0
    %1513 = vmatprep.subr.bf16.mxu0 0
    %1514 = vmatpush1.bf16.msra.mxu0 0
    %1515 = vmatprep.subr.bf16.mxu0 0
    %1516 = vmatpush1.bf16.msra.mxu0 0
    %1517 = vmatprep.subr.bf16.mxu0 0
    %1518 = vmatpush1.bf16.msra.mxu0 0
    %1519 = vmatprep.subr.bf16.mxu0 0
    %1520 = vmatpush1.bf16.msra.mxu0 0
    %1521 = vmatprep.subr.bf16.mxu0 0
    %1522 = vmatpush1.bf16.msra.mxu0 0
    %1523 = vmatprep.subr.bf16.mxu0 0
    %1524 = vmatpush1.bf16.msra.mxu0 0
    %1525 = vmatprep.mubr.bf16.mxu0 0
    %1526 = vmatmul.mubr.bf16.gmra.mrb[0].mxu0 %v1491
    %v1527 = vpop.f32.mrb[0].mxu0
    %v1528 = vadd.f32 %v1293, %v1527
    %v1529 = vpop.f32.mrb[0].mxu0
    %v1530 = vadd.f32 %v1297, %v1529
    %v1531 = vpop.f32.mrb[0].mxu0
    %v1532 = vpop.f32.mrb[0].mxu0
    %1533 = vdwg.mxu0
    %1534 = vmatprep.subr.bf16.mxu0 %v1429
    %1535 = vmatpush1.bf16.msra.mxu0 %v1428
    %1536 = vmatprep.subr.bf16.mxu0 %v1437
    %1537 = vmatpush1.bf16.msra.mxu0 %v1436
    %1538 = vmatprep.subr.bf16.mxu0 %v1445
    %1539 = vmatpush1.bf16.msra.mxu0 %v1444
    %1540 = vmatprep.subr.bf16.mxu0 %v1453
    %1541 = vmatpush1.bf16.msra.mxu0 %v1452
    %1542 = vmatprep.subr.bf16.mxu0 0
    %1543 = vmatpush1.bf16.msra.mxu0 0
    %1544 = vmatprep.subr.bf16.mxu0 0
    %1545 = vmatpush1.bf16.msra.mxu0 0
    %1546 = vmatprep.subr.bf16.mxu0 0
    %1547 = vmatpush1.bf16.msra.mxu0 0
    %1548 = vmatprep.subr.bf16.mxu0 0
    %1549 = vmatpush1.bf16.msra.mxu0 0
    %1550 = vmatprep.subr.bf16.mxu0 0
    %1551 = vmatpush1.bf16.msra.mxu0 0
    %1552 = vmatprep.subr.bf16.mxu0 0
    %1553 = vmatpush1.bf16.msra.mxu0 0
    %1554 = vmatprep.subr.bf16.mxu0 0
    %1555 = vmatpush1.bf16.msra.mxu0 0
    %1556 = vmatprep.subr.bf16.mxu0 0
    %1557 = vmatpush1.bf16.msra.mxu0 0
    %1558 = vmatprep.subr.bf16.mxu0 0
    %1559 = vmatpush1.bf16.msra.mxu0 0
    %1560 = vmatprep.subr.bf16.mxu0 0
    %1561 = vmatpush1.bf16.msra.mxu0 0
    %1562 = vmatprep.subr.bf16.mxu0 0
    %1563 = vmatpush1.bf16.msra.mxu0 0
    %1564 = vmatprep.subr.bf16.mxu0 0
    %1565 = vmatpush1.bf16.msra.mxu0 0
    %1566 = vmatprep.mubr.bf16.mxu0 0
    %1567 = vmatmul.mubr.bf16.gmra.mrb[0].mxu0 %v1491
    %v1568 = vpop.f32.mrb[0].mxu0
    %v1569 = vadd.f32 %v1301, %v1568
    %v1570 = vpop.f32.mrb[0].mxu0
    %v1571 = vadd.f32 %v1305, %v1570
    %v1572 = vpop.f32.mrb[0].mxu0
    %v1573 = vpop.f32.mrb[0].mxu0
    %1574 = vdwg.mxu0
    %1575 = vmatprep.subr.bf16.mxu0 %v1431
    %1576 = vmatpush1.bf16.msra.mxu0 %v1430
    %1577 = vmatprep.subr.bf16.mxu0 %v1439
    %1578 = vmatpush1.bf16.msra.mxu0 %v1438
    %1579 = vmatprep.subr.bf16.mxu0 %v1447
    %1580 = vmatpush1.bf16.msra.mxu0 %v1446
    %1581 = vmatprep.subr.bf16.mxu0 %v1455
    %1582 = vmatpush1.bf16.msra.mxu0 %v1454
    %1583 = vmatprep.subr.bf16.mxu0 0
    %1584 = vmatpush1.bf16.msra.mxu0 0
    %1585 = vmatprep.subr.bf16.mxu0 0
    %1586 = vmatpush1.bf16.msra.mxu0 0
    %1587 = vmatprep.subr.bf16.mxu0 0
    %1588 = vmatpush1.bf16.msra.mxu0 0
    %1589 = vmatprep.subr.bf16.mxu0 0
    %1590 = vmatpush1.bf16.msra.mxu0 0
    %1591 = vmatprep.subr.bf16.mxu0 0
    %1592 = vmatpush1.bf16.msra.mxu0 0
    %1593 = vmatprep.subr.bf16.mxu0 0
    %1594 = vmatpush1.bf16.msra.mxu0 0
    %1595 = vmatprep.subr.bf16.mxu0 0
    %1596 = vmatpush1.bf16.msra.mxu0 0
    %1597 = vmatprep.subr.bf16.mxu0 0
    %1598 = vmatpush1.bf16.msra.mxu0 0
    %1599 = vmatprep.subr.bf16.mxu0 0
    %1600 = vmatpush1.bf16.msra.mxu0 0
    %1601 = vmatprep.subr.bf16.mxu0 0
    %1602 = vmatpush1.bf16.msra.mxu0 0
    %1603 = vmatprep.subr.bf16.mxu0 0
    %1604 = vmatpush1.bf16.msra.mxu0 0
    %1605 = vmatprep.subr.bf16.mxu0 0
    %1606 = vmatpush1.bf16.msra.mxu0 0
    %1607 = vmatprep.mubr.bf16.mxu0 0
    %1608 = vmatmul.mubr.bf16.gmra.mrb[0].mxu0 %v1491
    %v1609 = vpop.f32.mrb[0].mxu0
    %v1610 = vadd.f32 %v1309, %v1609
    %v1611 = vpop.f32.mrb[0].mxu0
    %v1612 = vadd.f32 %v1313, %v1611
    %v1613 = vpop.f32.mrb[0].mxu0
    %v1614 = vpop.f32.mrb[0].mxu0
    %1615 = vdwg.mxu0
    %1616 = vmatprep.subr.bf16.mxu0 %v1433
    %1617 = vmatpush1.bf16.msra.mxu0 %v1432
    %1618 = vmatprep.subr.bf16.mxu0 %v1441
    %1619 = vmatpush1.bf16.msra.mxu0 %v1440
    %1620 = vmatprep.subr.bf16.mxu0 %v1449
    %1621 = vmatpush1.bf16.msra.mxu0 %v1448
    %1622 = vmatprep.subr.bf16.mxu0 %v1457
    %1623 = vmatpush1.bf16.msra.mxu0 %v1456
    %1624 = vmatprep.subr.bf16.mxu0 0
    %1625 = vmatpush1.bf16.msra.mxu0 0
    %1626 = vmatprep.subr.bf16.mxu0 0
    %1627 = vmatpush1.bf16.msra.mxu0 0
    %1628 = vmatprep.subr.bf16.mxu0 0
    %1629 = vmatpush1.bf16.msra.mxu0 0
    %1630 = vmatprep.subr.bf16.mxu0 0
    %1631 = vmatpush1.bf16.msra.mxu0 0
    %1632 = vmatprep.subr.bf16.mxu0 0
    %1633 = vmatpush1.bf16.msra.mxu0 0
    %1634 = vmatprep.subr.bf16.mxu0 0
    %1635 = vmatpush1.bf16.msra.mxu0 0
    %1636 = vmatprep.subr.bf16.mxu0 0
    %1637 = vmatpush1.bf16.msra.mxu0 0
    %1638 = vmatprep.subr.bf16.mxu0 0
    %1639 = vmatpush1.bf16.msra.mxu0 0
    %1640 = vmatprep.subr.bf16.mxu0 0
    %1641 = vmatpush1.bf16.msra.mxu0 0
    %1642 = vmatprep.subr.bf16.mxu0 0
    %1643 = vmatpush1.bf16.msra.mxu0 0
    %1644 = vmatprep.subr.bf16.mxu0 0
    %1645 = vmatpush1.bf16.msra.mxu0 0
    %1646 = vmatprep.subr.bf16.mxu0 0
    %1647 = vmatpush1.bf16.msra.mxu0 0
    %1648 = vmatprep.mubr.bf16.mxu0 0
    %1649 = vmatmul.mubr.bf16.gmra.mrb[0].mxu0 %v1491
    %v1650 = vpop.f32.mrb[0].mxu0
    %v1651 = vadd.f32 %v1317, %v1650
    %v1652 = vpop.f32.mrb[0].mxu0
    %v1653 = vadd.f32 %v1321, %v1652
    %v1654 = vpop.f32.mrb[0].mxu0
    %v1655 = vpop.f32.mrb[0].mxu0
    %1656 = vdwg.mxu0
    %1657 = vst [vmem:[#allocation2] sm:$0xff] %v1528
    %1658 = vst [vmem:[#allocation2 + $0x8] sm:$0xff] %v1530
    %1659 = vst [vmem:[#allocation2 + $0x10] sm:$0xff] %v1569
    %1660 = vst [vmem:[#allocation2 + $0x18] sm:$0xff] %v1571
    %1661 = vst [vmem:[#allocation2 + $0x20] sm:$0xff] %v1610
    %1662 = vst [vmem:[#allocation2 + $0x28] sm:$0xff] %v1612
    %1663 = vst [vmem:[#allocation2 + $0x30] sm:$0xff] %v1651
    %1664 = vst [vmem:[#allocation2 + $0x38] sm:$0xff] %v1653
    %1666 = vrot.lane.b32.xlu0 %v1064, 16
    %v1667 = vpop.permute.xlu0 %1666
    %1670 = vrot.lane.b32.xlu0 %v1050, 32
    %v1671 = vpop.permute.xlu0 %1670
    %1674 = vrot.lane.b32.xlu0 %v1067, 48
    %v1675 = vpop.permute.xlu0 %1674
    %v1677 = vsel %vm1084, %v987, %v1667
    %v1678 = vsel %vm893, %v1677, %v1671
    %vm1679 = vcmask 392192
    %v1680 = vsel %vm1679, %v1678, %v1675
    %1681 = vst.msk [vmem:[#allocation4] sm:$0xff] %vm778, %v1680
    %v1682 = vadd.f32 %v1050, 1.0
    %v1683 = vmul.f32 %v987, %v987
    %v1684 = vsub.f32 %v1682, %v1683
    %v1685 = vsub.f32 %v1684, %v1056
    %v1686 = vmul.f32 %v1685, -0.5
    %v1687 = vsel %vm1084, %v1686, 0.0
    %1688 = vadd.xlane.f32.xlu0 %v1687
    %v1689 = vpop.xlane.xlu0 %1688
    %v1690 = vsub.f32 %v1528, %v83
    %v1691 = vsub.f32 %v1530, %v84
    %v1692 = vsub.f32 %v1569, %v85
    %v1693 = vsub.f32 %v1571, %v86
    %v1694 = vsub.f32 %v1610, %v87
    %v1695 = vsub.f32 %v1612, %v88
    %v1696 = vsub.f32 %v1651, %v89
    %v1697 = vsub.f32 %v1653, %v90
    %v1698 = vmul.f32 %v1690, %v1690
    %v1699 = vmul.f32 %v1691, %v1691
    %v1700 = vmul.f32 %v1692, %v1692
    %v1701 = vmul.f32 %v1693, %v1693
    %v1702 = vmul.f32 %v1694, %v1694
    %v1703 = vmul.f32 %v1695, %v1695
    %v1704 = vmul.f32 %v1696, %v1696
    %v1705 = vmul.f32 %v1697, %v1697
    %v1706 = vadd.f32 %v1698, %v1699
    %v1707 = vadd.f32 %v1706, %v1700
    %v1708 = vadd.f32 %v1707, %v1701
    %v1709 = vadd.f32 %v1708, %v1702
    %v1710 = vadd.f32 %v1709, %v1703
    %v1711 = vadd.f32 %v1710, %v1704
    %v1712 = vadd.f32 %v1711, %v1705
    %1713 = vadd.xlane.f32.xlu0 %v1712
    %v1714 = vpop.xlane.xlu0 %1713
    %s1715 = smul.u32 0, 8
    %v1716 = vlaneseq
    %v1717 = vshrl.u32 %v1716, 7
    %v1718 = vstv %s1715
    %v1719 = vadd.s32 %v1718, %v1717
    %vm1720 = vcmp.lt.s32.totalorder %v1719, 2
    %v1721 = vsel %vm1720, 1, 0
    %v1722 = vcvt.s32.f32 %v1721
    %vm1723 = vcmask 7168
    %v1724 = vsel %vm1723, %v1689, %v1714
    %v1725 = vmul.f32 %v1724, %v1722
    %vm1726 = vcmask 15360
    %1727 = vst.msk [vmem:[%s26] sm:$0xff] %vm1726, %v1725
    // Predicated region
    $region98: #{tpu_custom_call.1} parent=1 // pred_check
      _
    $region99: #{tpu_custom_call.1} parent=1 // pred_check_branch
      %1729 = sbr.rel (0) target = $region101
    $region100: #{tpu_custom_call.1} parent=1 // pred_region
      %s1731 = ssub.s32 1024, 1024
      %1732 = vsyncadd [#allocation3], %s1731
      %s1734 = sshll.u32 [#allocation2], 4
      %s1735 = int_to_ptr.vmem [resolvable:$true] %s1734
      %1737 = dma.vmem_to_hbm [thread:$0]  %s1735, 1024, %s24, [#allocation3]
    $region101: #{tpu_custom_call.1} parent=1 // pred_fallthru
      _
    // Predicated region
    $region102: #{tpu_custom_call.1} parent=1 // pred_check
      _
    $region103: #{tpu_custom_call.1} parent=1 // pred_check_branch
      %1739 = sbr.rel (0) target = $region105
    $region104: #{tpu_custom_call.1} parent=1 // pred_region
      %s1741 = ssub.s32 128, 128
      %1742 = vsyncadd [#allocation5], %s1741
      %s1744 = sshll.u32 [#allocation4], 4
      %s1745 = int_to_ptr.vmem [resolvable:$true] %s1744
      %1747 = dma.vmem_to_hbm [thread:$0]  %s1745, 128, %s25, [#allocation5]
    $region105: #{tpu_custom_call.1} parent=1 // pred_fallthru
      _
    // Predicated region
    $region106: #{tpu_custom_call.1} parent=1 // pred_check
      _
    $region107: #{tpu_custom_call.1} parent=1 // pred_check_branch
      %1749 = sbr.rel (0) target = $region109
    $region108: #{tpu_custom_call.1} parent=1 // pred_region
      _
    $region109: #{tpu_custom_call.1} parent=1 // pred_fallthru
      _
    // Predicated region
    $region110: #{tpu_custom_call.1} parent=1 // pred_check
      _
    $region111: #{tpu_custom_call.1} parent=1 // pred_check_branch
      %1751 = sbr.rel (0) target = $region113
    $region112: #{tpu_custom_call.1} parent=1 // pred_region
      %1752 = dma.done [#allocation3], 1024
    $region113: #{tpu_custom_call.1} parent=1 // pred_fallthru
      _
    // Predicated region
    $region114: #{tpu_custom_call.1} parent=1 // pred_check
      _
    $region115: #{tpu_custom_call.1} parent=1 // pred_check_branch
      %1754 = sbr.rel (0) target = $region117
    $region116: #{tpu_custom_call.1} parent=1 // pred_region
      %1755 = dma.done [#allocation5], 128
    $region117: #{tpu_custom_call.1} parent=1 // pred_fallthru
      _
    // Predicated region
    $region118: #{tpu_custom_call.1} parent=1 // pred_check
      _
    $region119: #{tpu_custom_call.1} parent=1 // pred_check_branch
      %1757 = sbr.rel (0) target = $region121
    $region120: #{tpu_custom_call.1} parent=1 // pred_region
      _
    $region121: #{tpu_custom_call.1} parent=1 // pred_fallthru
      _
    %1758 = vsyncpa [#allocation3], 1
    %1759 = vsyncpa [#allocation5], 1

</llo_original>
